<compile_context>
chip_gen: v5e
topology: v5e:2x2
jax: 0.10.0
libtpu: 0.0.40
codegen_flags: <defaults>
</compile_context>

<pallas_src>
import functools
import math

import jax
import jax.numpy as jnp
from jax.experimental import pallas as pl
from jax.experimental.pallas import tpu as pltpu

_LANE = 128       # every last dim the kernel touches is padded to this
_CONV_PAD = 8     # sublane-aligned halo slot in the conv scratch (needs d_conv - 1 <= 8 <= T)


def _round_up(n, m):
    return ((n + m - 1) // m) * m


def _silu(v):
    # sigmoid via EUP approx reciprocal: exp and rcp both live in otherwise-idle slots
    return v * pl.reciprocal(1.0 + jnp.exp(-v), approx=True)


def _softplus(v):
    return jnp.maximum(v, 0.0) + jnp.log(1.0 + jnp.exp(-jnp.abs(v)))


# -----------------------------------------------------------------------------
# Fused kernel: one grid step == (one batch element, one time chunk of T rows).
# -----------------------------------------------------------------------------
def _mamba_block_kernel(seq_ref, ln_g_ref, ln_b_ref, w_in_ref, conv_w_ref,
                        conv_b_ref, w_xdt_ref, w_dt_ref, b_dt_ref, w_bc_ref,
                        a_ref, d_vec_ref, w_out_ref, o_ref, h_scr, conv_scr,
                        *, d_model):
    f32, bf16 = jnp.float32, jnp.bfloat16
    tc = pl.program_id(1)                       # time-chunk index (innermost, "arbitrary")

    seq = seq_ref[...].astype(f32)              # (T, Dp) — padded lanes are exact zeros
    T, Dp = seq.shape
    Ip = conv_b_ref.shape[1]                    # padded d_inner
    d_conv = conv_w_ref.shape[0]
    d_state = a_ref.shape[0]
    PAD = _CONV_PAD

    # -- init the persistent carries at the first chunk of each batch element --
    @pl.when(tc == 0)
    def _init():
        h_scr[...] = jnp.zeros_like(h_scr)                      # SSM state
        conv_scr[0:PAD, :] = jnp.zeros((PAD, Ip), f32)          # causal zero halo

    # ---- LayerNorm over the true d_model lanes (eps=1e-5, biased variance) ----
    lane = jax.lax.broadcasted_iota(jnp.int32, (T, Dp), 1)
    inv_d = 1.0 / d_model
    mean = jnp.sum(seq, axis=-1, keepdims=True) * inv_d
    diff = jnp.where(lane < d_model, seq - mean, 0.0)
    var = jnp.sum(diff * diff, axis=-1, keepdims=True) * inv_d
    h = diff * jax.lax.rsqrt(var + 1e-5) * ln_g_ref[...] + ln_b_ref[...]

    # ---- in_proj: fused [x | z], bf16 on the MXU, f32 accumulate --------------
    xz = jnp.dot(h.astype(bf16), w_in_ref[...], preferred_element_type=f32)  # (T, 2*Ip)
    x_raw, z = xz[:, :Ip], xz[:, Ip:]

    # ---- causal depthwise Conv1d via the halo scratch (no LxL shift matmuls) --
    conv_scr[PAD:PAD + T, :] = x_raw
    conv_w = conv_w_ref[...].astype(f32)
    acc = jnp.zeros((T, Ip), f32)
    for k in range(d_conv):                     # d_conv is tiny & static
        s = d_conv - 1 - k
        acc = acc + conv_w[k:k + 1, :] * conv_scr[PAD - s:PAD - s + T, :]
    # slide this chunk's tail into the halo slot for the next chunk (8-row aligned copy)
    conv_scr[0:PAD, :] = conv_scr[T:T + PAD, :]
    x = _silu(acc + conv_b_ref[...])            # (T, Ip)

    x_b = x.astype(bf16)

    # ---- dt path: dt_rank padded to a full 128-lane contraction ---------------
    dt_low = jnp.dot(x_b, w_xdt_ref[...], preferred_element_type=f32)        # (T, 128)
    dt = jnp.dot(dt_low.astype(bf16), w_dt_ref[...],
                 preferred_element_type=f32) + b_dt_ref[...]
    dt = _softplus(dt)                          # (T, Ip)

    # ---- B and C: one fused NT matmul, result already in (d_state, T) layout --
    nt_dims = (((1,), (1,)), ((), ()))
    bc_T = jax.lax.dot_general(w_bc_ref[...], x_b, nt_dims,
                               preferred_element_type=f32)                   # (2S, T)
    b_T, c_T = bc_T[:d_state, :], bc_T[d_state:, :]

    # ---- selective SSM scan over this chunk -----------------------------------
    # Everything independent of the recurrent state is hoisted out of the serial
    # chain (dtx, the EUP exps, the B lane-broadcasts); the per-step critical path
    # is a single (d_state, Ip) FMA.
    a_neg = a_ref[...]                          # -exp(A_log), (d_state, Ip), precomputed
    dtx = dt * x
    dA = [jnp.exp(dt[t:t + 1, :] * a_neg) for t in range(T)]
    dBx = [dtx[t:t + 1, :] * b_T[:, t:t + 1] for t in range(T)]

    h_state = h_scr[...]
    y_rows = []
    for t in range(T):                          # chunk-bounded unroll (T == 8)
        h_state = dA[t] * h_state + dBx[t]
        y_rows.append(jnp.sum(h_state * c_T[:, t:t + 1], axis=0, keepdims=True))
    h_scr[...] = h_state

    # one (T, Ip) slab; D*x skip term added vectorized outside the loop
    y = jnp.concatenate(y_rows, axis=0) + d_vec_ref[...] * x

    # ---- gate with SiLU(z), out_proj (bias=False), residual -------------------
    out = jnp.dot((y * _silu(z)).astype(bf16), w_out_ref[...],
                  preferred_element_type=f32)   # (T, Dp)
    o_ref[...] = (seq + out).astype(o_ref.dtype)


# -----------------------------------------------------------------------------
# Wrapper: lane-dense padding, weight fusion / pre-cast, pallas_call plumbing.
# -----------------------------------------------------------------------------
def mamba_block_forward(params, seq, *, time_chunk=8):
    """_MambaBlock.forward: seq + Mamba(LayerNorm(seq)).  seq: (B, L, d_model)."""
    f32, bf16 = jnp.float32, jnp.bfloat16
    B, L, D = seq.shape
    d_inner = params["w_in_x"].shape[1]
    d_state = params["w_x_bT"].shape[0]
    d_conv = params["conv_w"].shape[0]
    dt_rank = params["w_x_dt"].shape[1]

    T = min(time_chunk, L)
    assert T % 8 == 0 and L % T == 0, "seq len must split into 8-aligned time chunks"
    assert d_conv - 1 <= _CONV_PAD <= T, "conv halo slot too small/large"

    Dp = _round_up(D, _LANE)
    Ip = _round_up(d_inner, _LANE)
    Rp = _round_up(dt_rank, _LANE)

    def pad2(a, rows, cols):
        a = a.astype(f32)
        return jnp.pad(a, ((0, rows - a.shape[0]), (0, cols - a.shape[1])))

    # Zero padding is exact: padded lanes of every activation stay 0 end-to-end.
    seq_p = jnp.pad(seq, ((0, 0), (0, 0), (0, Dp - D)))
    weights = [
        pad2(params["ln_g"], 1, Dp),                                            # ln_g
        pad2(params["ln_b"], 1, Dp),                                            # ln_b
        jnp.concatenate([pad2(params["w_in_x"], Dp, Ip),
                         pad2(params["w_in_z"], Dp, Ip)], axis=1).astype(bf16),  # w_in
        pad2(params["conv_w"], d_conv, Ip),                                     # conv_w
        pad2(params["conv_b"], 1, Ip),                                          # conv_b
        pad2(params["w_x_dt"], Ip, Rp).astype(bf16),                            # w_xdt
        pad2(params["w_dt"], Rp, Ip).astype(bf16),                              # w_dt
        pad2(params["b_dt"], 1, Ip),                                            # b_dt
        jnp.concatenate([pad2(params["w_x_bT"], d_state, Ip),
                         pad2(params["w_x_cT"], d_state, Ip)], axis=0).astype(bf16),  # w_bc
        -jnp.exp(pad2(params["a_logT"], d_state, Ip)),                          # a_neg
        pad2(params["d_vec"], 1, Ip),                                           # d_vec
        pad2(params["w_out"], Ip, Dp).astype(bf16),                             # w_out
    ]

    def replicated(arr):
        zero = (0,) * arr.ndim
        return pl.BlockSpec(arr.shape, lambda b, t, _z=zero: _z)

    seq_spec = pl.BlockSpec((pl.Squeezed(), T, Dp), lambda b, t: (b, t, 0))
    out_spec = pl.BlockSpec((pl.Squeezed(), T, Dp), lambda b, t: (b, t, 0))

    kernel = functools.partial(_mamba_block_kernel, d_model=D)

    out_p = pl.pallas_call(
        kernel,
        grid=(B, L // T),
        in_specs=[seq_spec] + [replicated(w) for w in weights],
        out_specs=out_spec,
        out_shape=jax.ShapeDtypeStruct((B, L, Dp), seq.dtype),
        scratch_shapes=[pltpu.VMEM((d_state, Ip), f32),           # SSM state carry
                        pltpu.VMEM((_CONV_PAD + T, Ip), f32)],    # conv window + halo
        compiler_params=pltpu.CompilerParams(
            dimension_semantics=("parallel", "arbitrary"),
            vmem_limit_bytes=48 * 1024 * 1024),
    )(seq_p, *weights)

    return out_p[:, :, :D]


# -----------------------------------------------------------------------------
# Pure-JAX reference mirroring the kernel's precision policy (bf16 MXU inputs,
# f32 accumulation / state) for a tight tolerance check.
# -----------------------------------------------------------------------------
def mamba_block_reference(params, seq):
    f32, bf16 = jnp.float32, jnp.bfloat16
    x_in = seq.astype(f32)
    B, L, D = x_in.shape
    d_conv = params["conv_w"].shape[0]

    def bdot(a, b):
        return jnp.dot(a.astype(bf16), b.astype(bf16), preferred_element_type=f32)

    mean = jnp.mean(x_in, axis=-1, keepdims=True)
    var = jnp.mean(jnp.square(x_in - mean), axis=-1, keepdims=True)
    h = (x_in - mean) * jax.lax.rsqrt(var + 1e-5) * params["ln_g"][0] + params["ln_b"][0]

    x = bdot(h, params["w_in_x"])
    z = bdot(h, params["w_in_z"])

    xp = jnp.pad(x, ((0, 0), (d_conv - 1, 0), (0, 0)))
    xc = params["conv_b"][0]
    for k in range(d_conv):
        xc = xc + params["conv_w"][k][None, None, :] * xp[:, k:k + L, :]
    x = xc * jax.nn.sigmoid(xc)

    dt = jax.nn.softplus(bdot(bdot(x, params["w_x_dt"]), params["w_dt"]) + params["b_dt"][0])
    b_mat = bdot(x, params["w_x_bT"].T)          # (B, L, d_state)
    c_mat = bdot(x, params["w_x_cT"].T)          # (B, L, d_state)

    A = -jnp.exp(params["a_logT"])               # (d_state, d_inner)
    d_vec = params["d_vec"][0]

    def step(h_prev, inp):                       # h: (B, d_state, d_inner)
        dt_t, x_t, b_t, c_t = inp
        dA = jnp.exp(dt_t[:, None, :] * A[None, :, :])
        h_new = dA * h_prev + (dt_t * x_t)[:, None, :] * b_t[:, :, None]
        y_t = jnp.sum(h_new * c_t[:, :, None], axis=1) + d_vec * x_t
        return h_new, y_t

    h0 = jnp.zeros((B, A.shape[0], x.shape[-1]), f32)
    xs = (jnp.moveaxis(dt, 1, 0), jnp.moveaxis(x, 1, 0),
          jnp.moveaxis(b_mat, 1, 0), jnp.moveaxis(c_mat, 1, 0))
    _, ys = jax.lax.scan(step, h0, xs)
    y = jnp.moveaxis(ys, 0, 1)

    out = bdot(y * (z * jax.nn.sigmoid(z)), params["w_out"])
    return (x_in + out).astype(seq.dtype)


# -----------------------------------------------------------------------------
# Deterministic synthetic parameters (natural / PyTorch-like shapes)
# -----------------------------------------------------------------------------
def init_params(key, *, d_model, d_state, d_conv, expand):
    d_inner = expand * d_model
    dt_rank = math.ceil(d_model / 16)
    ks = jax.random.split(key, 9)

    def dense(k, shape, fan_in):
        return (1.0 / math.sqrt(fan_in)) * jax.random.normal(k, shape, jnp.float32)

    dt_init = jnp.linspace(1e-3, 1e-1, d_inner, dtype=jnp.float32)
    b_dt = jnp.log(jnp.expm1(dt_init))[None, :]                    # inverse softplus
    a_logT = jnp.tile(
        jnp.log(jnp.arange(1, d_state + 1, dtype=jnp.float32))[:, None], (1, d_inner))

    return {
        "ln_g": jnp.ones((1, d_model), jnp.float32),
        "ln_b": jnp.zeros((1, d_model), jnp.float32),
        "w_in_x": dense(ks[0], (d_model, d_inner), d_model),
        "w_in_z": dense(ks[1], (d_model, d_inner), d_model),
        "conv_w": 0.3 * jax.random.normal(ks[2], (d_conv, d_inner), jnp.float32),
        "conv_b": 0.1 * jax.random.normal(ks[3], (1, d_inner), jnp.float32),
        "w_x_dt": dense(ks[4], (d_inner, dt_rank), d_inner),
        "w_x_bT": dense(ks[5], (d_state, d_inner), d_inner),
        "w_x_cT": dense(ks[6], (d_state, d_inner), d_inner),
        "w_dt": dense(ks[7], (dt_rank, d_inner), dt_rank),
        "b_dt": b_dt,
        "a_logT": a_logT,                                          # (d_state, d_inner)
        "d_vec": jnp.ones((1, d_inner), jnp.float32),
        "w_out": dense(ks[8], (d_inner, d_model), d_inner),
    }


# -----------------------------------------------------------------------------
if __name__ == "__main__":
    B, L = 2, 16                     # L = 2 time chunks -> exercises the state/halo carries
    D_MODEL, D_STATE, D_CONV, EXPAND = 32, 16, 4, 2

    key = jax.random.PRNGKey(0)
    k_param, k_seq = jax.random.split(key)
    params = init_params(k_param, d_model=D_MODEL, d_state=D_STATE,
                         d_conv=D_CONV, expand=EXPAND)
    seq = jax.random.normal(k_seq, (B, L, D_MODEL), jnp.float32)

    fwd = jax.jit(mamba_block_forward)
    out = jax.block_until_ready(fwd(params, seq))

    assert out.shape == (B, L, D_MODEL), out.shape
    assert bool(jnp.all(jnp.isfinite(out)))

    ref = mamba_block_reference(params, seq)
    max_err = float(jnp.max(jnp.abs(out - ref)))
    # bf16 MXU operands are mirrored in the reference; residual error comes from the
    # approx-EUP sigmoids and summation-order differences.
    assert max_err < 3e-2, f"kernel vs reference max |err| = {max_err}"

    print("KERNEL_OK")
</pallas_src>

<mosaic_0001>
module attributes {stable_mosaic.version = 11 : i64} {
  func.func @_mamba_block_kernel(%arg0: i32, %arg1: i32, %arg2: memref<1x8x128xf32, #tpu.memory_space<vmem>>, %arg3: memref<1x128xf32, #tpu.memory_space<vmem>>, %arg4: memref<1x128xf32, #tpu.memory_space<vmem>>, %arg5: memref<128x256xbf16, #tpu.memory_space<vmem>>, %arg6: memref<4x128xf32, #tpu.memory_space<vmem>>, %arg7: memref<1x128xf32, #tpu.memory_space<vmem>>, %arg8: memref<128x128xbf16, #tpu.memory_space<vmem>>, %arg9: memref<128x128xbf16, #tpu.memory_space<vmem>>, %arg10: memref<1x128xf32, #tpu.memory_space<vmem>>, %arg11: memref<32x128xbf16, #tpu.memory_space<vmem>>, %arg12: memref<16x128xf32, #tpu.memory_space<vmem>>, %arg13: memref<1x128xf32, #tpu.memory_space<vmem>>, %arg14: memref<128x128xbf16, #tpu.memory_space<vmem>>, %arg15: memref<1x8x128xf32, #tpu.memory_space<vmem>>, %arg16: memref<16x128xf32, #tpu.memory_space<vmem>>, %arg17: memref<16x128xf32, #tpu.memory_space<vmem>>) attributes {dimension_semantics = [#tpu.dimension_semantics<parallel>, #tpu.dimension_semantics<arbitrary>], iteration_bounds = array<i64: 2, 2>, scalar_prefetch = 0 : i64, scratch_operands = 2 : i64, tpu.core_type = #tpu.core_type<tc>, window_params = [{transform_indices = @transform_0, window_bounds = array<i64: 1, 8, 128>}, {pipeline_mode = #tpu.pipeline_mode<synchronous>, transform_indices = @transform_1, window_bounds = array<i64: 1, 128>}, {pipeline_mode = #tpu.pipeline_mode<synchronous>, transform_indices = @transform_2, window_bounds = array<i64: 1, 128>}, {pipeline_mode = #tpu.pipeline_mode<synchronous>, transform_indices = @transform_3, window_bounds = array<i64: 128, 256>}, {pipeline_mode = #tpu.pipeline_mode<synchronous>, transform_indices = @transform_4, window_bounds = array<i64: 4, 128>}, {pipeline_mode = #tpu.pipeline_mode<synchronous>, transform_indices = @transform_5, window_bounds = array<i64: 1, 128>}, {pipeline_mode = #tpu.pipeline_mode<synchronous>, transform_indices = @transform_6, window_bounds = array<i64: 128, 128>}, {pipeline_mode = #tpu.pipeline_mode<synchronous>, transform_indices = @transform_7, window_bounds = array<i64: 128, 128>}, {pipeline_mode = #tpu.pipeline_mode<synchronous>, transform_indices = @transform_8, window_bounds = array<i64: 1, 128>}, {pipeline_mode = #tpu.pipeline_mode<synchronous>, transform_indices = @transform_9, window_bounds = array<i64: 32, 128>}, {pipeline_mode = #tpu.pipeline_mode<synchronous>, transform_indices = @transform_10, window_bounds = array<i64: 16, 128>}, {pipeline_mode = #tpu.pipeline_mode<synchronous>, transform_indices = @transform_11, window_bounds = array<i64: 1, 128>}, {pipeline_mode = #tpu.pipeline_mode<synchronous>, transform_indices = @transform_12, window_bounds = array<i64: 128, 128>}, {transform_indices = @transform_13, window_bounds = array<i64: 1, 8, 128>}]} {
    %c0 = arith.constant 0 : index
    %c0_0 = arith.constant 0 : index
    %c0_1 = arith.constant 0 : index
    %0 = vector.load %arg2[%c0, %c0_0, %c0_1] : memref<1x8x128xf32, #tpu.memory_space<vmem>>, vector<1x8x128xf32>
    %1 = vector.shape_cast %0 : vector<1x8x128xf32> to vector<8x128xf32>
    %c0_i32 = arith.constant 0 : i32
    %2 = arith.cmpi eq, %arg1, %c0_i32 : i32
    %3 = arith.extui %2 : i1 to i32
    %c0_i32_2 = arith.constant 0 : i32
    %4 = arith.cmpi ne, %3, %c0_i32_2 : i32
    scf.if %4 {
      %cst_70 = arith.constant 0.000000e+00 : f32
      %247 = vector.broadcast %cst_70 : f32 to vector<16x128xf32>
      %c0_71 = arith.constant 0 : index
      %c0_72 = arith.constant 0 : index
      %248 = vector.load %arg16[%c0_71, %c0_72] : memref<16x128xf32, #tpu.memory_space<vmem>>, vector<16x128xf32>
      tpu.vector_store %arg16[%c0_71, %c0_72], %247 {strides = array<i32>} : memref<16x128xf32, #tpu.memory_space<vmem>>, vector<16x128xf32>,
      %cst_73 = arith.constant 0.000000e+00 : f32
      %249 = vector.broadcast %cst_73 : f32 to vector<8x128xf32>
      %c0_74 = arith.constant 0 : index
      %c0_75 = arith.constant 0 : index
      %250 = vector.load %arg17[%c0_74, %c0_75] : memref<16x128xf32, #tpu.memory_space<vmem>>, vector<8x128xf32>
      tpu.vector_store %arg17[%c0_74, %c0_75], %249 {strides = array<i32>} : memref<16x128xf32, #tpu.memory_space<vmem>>, vector<8x128xf32>,
    } else {
    }
    %5 = tpu.iota {dimensions = array<i32: 1>} : vector<8x128xi32>
    %cst = arith.constant dense<0.000000e+00> : vector<8xf32>
    %6 = vector.multi_reduction <add>, %1, %cst [1] : vector<8x128xf32> to vector<8xf32>
    %7 = vector.shape_cast %6 : vector<8xf32> to vector<8x1xf32>
    %cst_3 = arith.constant 3.125000e-02 : f32
    %8 = vector.broadcast %cst_3 : f32 to vector<8x1xf32>
    %9 = arith.mulf %7, %8 : vector<8x1xf32>
    %c32_i32 = arith.constant 32 : i32
    %10 = vector.broadcast %c32_i32 : i32 to vector<8x128xi32>
    %11 = arith.cmpi slt, %5, %10 : vector<8x128xi32>
    %12 = vector.broadcast %9 : vector<8x1xf32> to vector<8x128xf32>
    %13 = arith.subf %1, %12 : vector<8x128xf32>
    %cst_4 = arith.constant 0.000000e+00 : f32
    %14 = vector.broadcast %cst_4 : f32 to vector<8x128xf32>
    %15 = arith.select %11, %13, %14 : vector<8x128xi1>, vector<8x128xf32>
    %16 = arith.mulf %15, %15 : vector<8x128xf32>
    %cst_5 = arith.constant dense<0.000000e+00> : vector<8xf32>
    %17 = vector.multi_reduction <add>, %16, %cst_5 [1] : vector<8x128xf32> to vector<8xf32>
    %18 = vector.shape_cast %17 : vector<8xf32> to vector<8x1xf32>
    %cst_6 = arith.constant 3.125000e-02 : f32
    %19 = vector.broadcast %cst_6 : f32 to vector<8x1xf32>
    %20 = arith.mulf %18, %19 : vector<8x1xf32>
    %cst_7 = arith.constant 9.99999974E-6 : f32
    %21 = vector.broadcast %cst_7 : f32 to vector<8x1xf32>
    %22 = arith.addf %20, %21 : vector<8x1xf32>
    %23 = math.rsqrt %22 : vector<8x1xf32>
    %24 = vector.broadcast %23 : vector<8x1xf32> to vector<8x128xf32>
    %25 = arith.mulf %15, %24 : vector<8x128xf32>
    %c0_8 = arith.constant 0 : index
    %c0_9 = arith.constant 0 : index
    %26 = vector.load %arg3[%c0_8, %c0_9] : memref<1x128xf32, #tpu.memory_space<vmem>>, vector<1x128xf32>
    %27 = vector.broadcast %26 : vector<1x128xf32> to vector<8x128xf32>
    %28 = arith.mulf %25, %27 : vector<8x128xf32>
    %c0_10 = arith.constant 0 : index
    %c0_11 = arith.constant 0 : index
    %29 = vector.load %arg4[%c0_10, %c0_11] : memref<1x128xf32, #tpu.memory_space<vmem>>, vector<1x128xf32>
    %30 = vector.broadcast %29 : vector<1x128xf32> to vector<8x128xf32>
    %31 = arith.addf %28, %30 : vector<8x128xf32>
    %32 = arith.truncf %31 : vector<8x128xf32> to vector<8x128xbf16>
    %c0_12 = arith.constant 0 : index
    %c0_13 = arith.constant 0 : index
    %33 = vector.load %arg5[%c0_12, %c0_13] : memref<128x256xbf16, #tpu.memory_space<vmem>>, vector<128x256xbf16>
    %cst_14 = arith.constant dense<0.000000e+00> : vector<8x256xf32>
    %34 = tpu.matmul %32, %33, %cst_14 {dimension_numbers = #tpu.dot_dimension_numbers<[1], [0], [0], [1], [0, 0, 1, 1], [], []>} : vector<8x128xbf16>, vector<128x256xbf16>, vector<8x256xf32> -> vector<8x256xf32>
    %35 = vector.extract_strided_slice %34 {offsets = [0, 0], sizes = [8, 128], strides = [1, 1]} : vector<8x256xf32> to vector<8x128xf32>
    %36 = vector.extract_strided_slice %34 {offsets = [0, 128], sizes = [8, 128], strides = [1, 1]} : vector<8x256xf32> to vector<8x128xf32>
    %c8 = arith.constant 8 : index
    %c0_15 = arith.constant 0 : index
    %37 = vector.load %arg17[%c8, %c0_15] : memref<16x128xf32, #tpu.memory_space<vmem>>, vector<8x128xf32>
    tpu.vector_store %arg17[%c8, %c0_15], %35 {strides = array<i32>} : memref<16x128xf32, #tpu.memory_space<vmem>>, vector<8x128xf32>,
    %c0_16 = arith.constant 0 : index
    %c0_17 = arith.constant 0 : index
    %38 = vector.load %arg6[%c0_16, %c0_17] : memref<4x128xf32, #tpu.memory_space<vmem>>, vector<4x128xf32>
    %cst_18 = arith.constant 0.000000e+00 : f32
    %39 = vector.broadcast %cst_18 : f32 to vector<8x128xf32>
    %40 = vector.extract_strided_slice %38 {offsets = [0, 0], sizes = [1, 128], strides = [1, 1]} : vector<4x128xf32> to vector<1x128xf32>
    %c5 = arith.constant 5 : index
    %c0_19 = arith.constant 0 : index
    %41 = vector.load %arg17[%c5, %c0_19] : memref<16x128xf32, #tpu.memory_space<vmem>>, vector<8x128xf32>
    %42 = vector.broadcast %40 : vector<1x128xf32> to vector<8x128xf32>
    %43 = arith.mulf %42, %41 : vector<8x128xf32>
    %44 = arith.addf %39, %43 : vector<8x128xf32>
    %45 = vector.extract_strided_slice %38 {offsets = [1, 0], sizes = [1, 128], strides = [1, 1]} : vector<4x128xf32> to vector<1x128xf32>
    %c6 = arith.constant 6 : index
    %c0_20 = arith.constant 0 : index
    %46 = vector.load %arg17[%c6, %c0_20] : memref<16x128xf32, #tpu.memory_space<vmem>>, vector<8x128xf32>
    %47 = vector.broadcast %45 : vector<1x128xf32> to vector<8x128xf32>
    %48 = arith.mulf %47, %46 : vector<8x128xf32>
    %49 = arith.addf %44, %48 : vector<8x128xf32>
    %50 = vector.extract_strided_slice %38 {offsets = [2, 0], sizes = [1, 128], strides = [1, 1]} : vector<4x128xf32> to vector<1x128xf32>
    %c7 = arith.constant 7 : index
    %c0_21 = arith.constant 0 : index
    %51 = vector.load %arg17[%c7, %c0_21] : memref<16x128xf32, #tpu.memory_space<vmem>>, vector<8x128xf32>
    %52 = vector.broadcast %50 : vector<1x128xf32> to vector<8x128xf32>
    %53 = arith.mulf %52, %51 : vector<8x128xf32>
    %54 = arith.addf %49, %53 : vector<8x128xf32>
    %55 = vector.extract_strided_slice %38 {offsets = [3, 0], sizes = [1, 128], strides = [1, 1]} : vector<4x128xf32> to vector<1x128xf32>
    %c8_22 = arith.constant 8 : index
    %c0_23 = arith.constant 0 : index
    %56 = vector.load %arg17[%c8_22, %c0_23] : memref<16x128xf32, #tpu.memory_space<vmem>>, vector<8x128xf32>
    %57 = vector.broadcast %55 : vector<1x128xf32> to vector<8x128xf32>
    %58 = arith.mulf %57, %56 : vector<8x128xf32>
    %59 = arith.addf %54, %58 : vector<8x128xf32>
    %c8_24 = arith.constant 8 : index
    %c0_25 = arith.constant 0 : index
    %60 = vector.load %arg17[%c8_24, %c0_25] : memref<16x128xf32, #tpu.memory_space<vmem>>, vector<8x128xf32>
    %c0_26 = arith.constant 0 : index
    %c0_27 = arith.constant 0 : index
    %61 = vector.load %arg17[%c0_26, %c0_27] : memref<16x128xf32, #tpu.memory_space<vmem>>, vector<8x128xf32>
    tpu.vector_store %arg17[%c0_26, %c0_27], %60 {strides = array<i32>} : memref<16x128xf32, #tpu.memory_space<vmem>>, vector<8x128xf32>,
    %c0_28 = arith.constant 0 : index
    %c0_29 = arith.constant 0 : index
    %62 = vector.load %arg7[%c0_28, %c0_29] : memref<1x128xf32, #tpu.memory_space<vmem>>, vector<1x128xf32>
    %63 = vector.broadcast %62 : vector<1x128xf32> to vector<8x128xf32>
    %64 = arith.addf %59, %63 : vector<8x128xf32>
    %cst_30 = arith.constant 0.000000e+00 : f32
    %65 = vector.broadcast %cst_30 : f32 to vector<8x128xf32>
    %66 = arith.subf %65, %64 : vector<8x128xf32>
    %67 = math.exp %66 : vector<8x128xf32>
    %cst_31 = arith.constant 1.000000e+00 : f32
    %68 = vector.broadcast %cst_31 : f32 to vector<8x128xf32>
    %69 = arith.addf %68, %67 : vector<8x128xf32>
    %70 = tpu.reciprocal %69 {approx = true} : vector<8x128xf32> -> vector<8x128xf32>
    %71 = arith.mulf %64, %70 : vector<8x128xf32>
    %72 = arith.truncf %71 : vector<8x128xf32> to vector<8x128xbf16>
    %c0_32 = arith.constant 0 : index
    %c0_33 = arith.constant 0 : index
    %73 = vector.load %arg8[%c0_32, %c0_33] : memref<128x128xbf16, #tpu.memory_space<vmem>>, vector<128x128xbf16>
    %cst_34 = arith.constant dense<0.000000e+00> : vector<8x128xf32>
    %74 = tpu.matmul %72, %73, %cst_34 {dimension_numbers = #tpu.dot_dimension_numbers<[1], [0], [0], [1], [0, 0, 1, 1], [], []>} : vector<8x128xbf16>, vector<128x128xbf16>, vector<8x128xf32> -> vector<8x128xf32>
    %75 = arith.truncf %74 : vector<8x128xf32> to vector<8x128xbf16>
    %c0_35 = arith.constant 0 : index
    %c0_36 = arith.constant 0 : index
    %76 = vector.load %arg9[%c0_35, %c0_36] : memref<128x128xbf16, #tpu.memory_space<vmem>>, vector<128x128xbf16>
    %cst_37 = arith.constant dense<0.000000e+00> : vector<8x128xf32>
    %77 = tpu.matmul %75, %76, %cst_37 {dimension_numbers = #tpu.dot_dimension_numbers<[1], [0], [0], [1], [0, 0, 1, 1], [], []>} : vector<8x128xbf16>, vector<128x128xbf16>, vector<8x128xf32> -> vector<8x128xf32>
    %c0_38 = arith.constant 0 : index
    %c0_39 = arith.constant 0 : index
    %78 = vector.load %arg10[%c0_38, %c0_39] : memref<1x128xf32, #tpu.memory_space<vmem>>, vector<1x128xf32>
    %79 = vector.broadcast %78 : vector<1x128xf32> to vector<8x128xf32>
    %80 = arith.addf %77, %79 : vector<8x128xf32>
    %cst_40 = arith.constant 0.000000e+00 : f32
    %81 = vector.broadcast %cst_40 : f32 to vector<8x128xf32>
    %82 = arith.maximumf %80, %81 : vector<8x128xf32>
    %83 = math.absf %80 : vector<8x128xf32>
    %cst_41 = arith.constant 0.000000e+00 : f32
    %84 = vector.broadcast %cst_41 : f32 to vector<8x128xf32>
    %85 = arith.subf %84, %83 : vector<8x128xf32>
    %86 = math.exp %85 : vector<8x128xf32>
    %cst_42 = arith.constant 1.000000e+00 : f32
    %87 = vector.broadcast %cst_42 : f32 to vector<8x128xf32>
    %88 = arith.addf %87, %86 : vector<8x128xf32>
    %89 = math.log %88 : vector<8x128xf32>
    %90 = arith.addf %82, %89 : vector<8x128xf32>
    %c0_43 = arith.constant 0 : index
    %c0_44 = arith.constant 0 : index
    %91 = vector.load %arg11[%c0_43, %c0_44] : memref<32x128xbf16, #tpu.memory_space<vmem>>, vector<32x128xbf16>
    %cst_45 = arith.constant dense<0.000000e+00> : vector<32x8xf32>
    %92 = tpu.matmul %91, %72, %cst_45 {dimension_numbers = #tpu.dot_dimension_numbers<[1], [1], [0], [0], [0, 0, 1, 0], [], []>} : vector<32x128xbf16>, vector<8x128xbf16>, vector<32x8xf32> -> vector<32x8xf32>
    %93 = vector.extract_strided_slice %92 {offsets = [0, 0], sizes = [16, 8], strides = [1, 1]} : vector<32x8xf32> to vector<16x8xf32>
    %94 = vector.extract_strided_slice %92 {offsets = [16, 0], sizes = [16, 8], strides = [1, 1]} : vector<32x8xf32> to vector<16x8xf32>
    %c0_46 = arith.constant 0 : index
    %c0_47 = arith.constant 0 : index
    %95 = vector.load %arg12[%c0_46, %c0_47] : memref<16x128xf32, #tpu.memory_space<vmem>>, vector<16x128xf32>
    %96 = arith.mulf %90, %71 : vector<8x128xf32>
    %97 = vector.extract_strided_slice %90 {offsets = [0, 0], sizes = [1, 128], strides = [1, 1]} : vector<8x128xf32> to vector<1x128xf32>
    %98 = vector.broadcast %97 : vector<1x128xf32> to vector<16x128xf32>
    %99 = arith.mulf %98, %95 : vector<16x128xf32>
    %100 = math.exp %99 : vector<16x128xf32>
    %101 = vector.extract_strided_slice %90 {offsets = [1, 0], sizes = [1, 128], strides = [1, 1]} : vector<8x128xf32> to vector<1x128xf32>
    %102 = vector.broadcast %101 : vector<1x128xf32> to vector<16x128xf32>
    %103 = arith.mulf %102, %95 : vector<16x128xf32>
    %104 = math.exp %103 : vector<16x128xf32>
    %105 = vector.extract_strided_slice %90 {offsets = [2, 0], sizes = [1, 128], strides = [1, 1]} : vector<8x128xf32> to vector<1x128xf32>
    %106 = vector.broadcast %105 : vector<1x128xf32> to vector<16x128xf32>
    %107 = arith.mulf %106, %95 : vector<16x128xf32>
    %108 = math.exp %107 : vector<16x128xf32>
    %109 = vector.extract_strided_slice %90 {offsets = [3, 0], sizes = [1, 128], strides = [1, 1]} : vector<8x128xf32> to vector<1x128xf32>
    %110 = vector.broadcast %109 : vector<1x128xf32> to vector<16x128xf32>
    %111 = arith.mulf %110, %95 : vector<16x128xf32>
    %112 = math.exp %111 : vector<16x128xf32>
    %113 = vector.extract_strided_slice %90 {offsets = [4, 0], sizes = [1, 128], strides = [1, 1]} : vector<8x128xf32> to vector<1x128xf32>
    %114 = vector.broadcast %113 : vector<1x128xf32> to vector<16x128xf32>
    %115 = arith.mulf %114, %95 : vector<16x128xf32>
    %116 = math.exp %115 : vector<16x128xf32>
    %117 = vector.extract_strided_slice %90 {offsets = [5, 0], sizes = [1, 128], strides = [1, 1]} : vector<8x128xf32> to vector<1x128xf32>
    %118 = vector.broadcast %117 : vector<1x128xf32> to vector<16x128xf32>
    %119 = arith.mulf %118, %95 : vector<16x128xf32>
    %120 = math.exp %119 : vector<16x128xf32>
    %121 = vector.extract_strided_slice %90 {offsets = [6, 0], sizes = [1, 128], strides = [1, 1]} : vector<8x128xf32> to vector<1x128xf32>
    %122 = vector.broadcast %121 : vector<1x128xf32> to vector<16x128xf32>
    %123 = arith.mulf %122, %95 : vector<16x128xf32>
    %124 = math.exp %123 : vector<16x128xf32>
    %125 = vector.extract_strided_slice %90 {offsets = [7, 0], sizes = [1, 128], strides = [1, 1]} : vector<8x128xf32> to vector<1x128xf32>
    %126 = vector.broadcast %125 : vector<1x128xf32> to vector<16x128xf32>
    %127 = arith.mulf %126, %95 : vector<16x128xf32>
    %128 = math.exp %127 : vector<16x128xf32>
    %129 = vector.extract_strided_slice %96 {offsets = [0, 0], sizes = [1, 128], strides = [1, 1]} : vector<8x128xf32> to vector<1x128xf32>
    %130 = vector.extract_strided_slice %93 {offsets = [0, 0], sizes = [16, 1], strides = [1, 1]} : vector<16x8xf32> to vector<16x1xf32>
    %131 = vector.broadcast %129 : vector<1x128xf32> to vector<16x128xf32>
    %132 = vector.broadcast %130 : vector<16x1xf32> to vector<16x128xf32>
    %133 = arith.mulf %131, %132 : vector<16x128xf32>
    %134 = vector.extract_strided_slice %96 {offsets = [1, 0], sizes = [1, 128], strides = [1, 1]} : vector<8x128xf32> to vector<1x128xf32>
    %135 = vector.extract_strided_slice %93 {offsets = [0, 1], sizes = [16, 1], strides = [1, 1]} : vector<16x8xf32> to vector<16x1xf32>
    %136 = vector.broadcast %134 : vector<1x128xf32> to vector<16x128xf32>
    %137 = vector.broadcast %135 : vector<16x1xf32> to vector<16x128xf32>
    %138 = arith.mulf %136, %137 : vector<16x128xf32>
    %139 = vector.extract_strided_slice %96 {offsets = [2, 0], sizes = [1, 128], strides = [1, 1]} : vector<8x128xf32> to vector<1x128xf32>
    %140 = vector.extract_strided_slice %93 {offsets = [0, 2], sizes = [16, 1], strides = [1, 1]} : vector<16x8xf32> to vector<16x1xf32>
    %141 = vector.broadcast %139 : vector<1x128xf32> to vector<16x128xf32>
    %142 = vector.broadcast %140 : vector<16x1xf32> to vector<16x128xf32>
    %143 = arith.mulf %141, %142 : vector<16x128xf32>
    %144 = vector.extract_strided_slice %96 {offsets = [3, 0], sizes = [1, 128], strides = [1, 1]} : vector<8x128xf32> to vector<1x128xf32>
    %145 = vector.extract_strided_slice %93 {offsets = [0, 3], sizes = [16, 1], strides = [1, 1]} : vector<16x8xf32> to vector<16x1xf32>
    %146 = vector.broadcast %144 : vector<1x128xf32> to vector<16x128xf32>
    %147 = vector.broadcast %145 : vector<16x1xf32> to vector<16x128xf32>
    %148 = arith.mulf %146, %147 : vector<16x128xf32>
    %149 = vector.extract_strided_slice %96 {offsets = [4, 0], sizes = [1, 128], strides = [1, 1]} : vector<8x128xf32> to vector<1x128xf32>
    %150 = vector.extract_strided_slice %93 {offsets = [0, 4], sizes = [16, 1], strides = [1, 1]} : vector<16x8xf32> to vector<16x1xf32>
    %151 = vector.broadcast %149 : vector<1x128xf32> to vector<16x128xf32>
    %152 = vector.broadcast %150 : vector<16x1xf32> to vector<16x128xf32>
    %153 = arith.mulf %151, %152 : vector<16x128xf32>
    %154 = vector.extract_strided_slice %96 {offsets = [5, 0], sizes = [1, 128], strides = [1, 1]} : vector<8x128xf32> to vector<1x128xf32>
    %155 = vector.extract_strided_slice %93 {offsets = [0, 5], sizes = [16, 1], strides = [1, 1]} : vector<16x8xf32> to vector<16x1xf32>
    %156 = vector.broadcast %154 : vector<1x128xf32> to vector<16x128xf32>
    %157 = vector.broadcast %155 : vector<16x1xf32> to vector<16x128xf32>
    %158 = arith.mulf %156, %157 : vector<16x128xf32>
    %159 = vector.extract_strided_slice %96 {offsets = [6, 0], sizes = [1, 128], strides = [1, 1]} : vector<8x128xf32> to vector<1x128xf32>
    %160 = vector.extract_strided_slice %93 {offsets = [0, 6], sizes = [16, 1], strides = [1, 1]} : vector<16x8xf32> to vector<16x1xf32>
    %161 = vector.broadcast %159 : vector<1x128xf32> to vector<16x128xf32>
    %162 = vector.broadcast %160 : vector<16x1xf32> to vector<16x128xf32>
    %163 = arith.mulf %161, %162 : vector<16x128xf32>
    %164 = vector.extract_strided_slice %96 {offsets = [7, 0], sizes = [1, 128], strides = [1, 1]} : vector<8x128xf32> to vector<1x128xf32>
    %165 = vector.extract_strided_slice %93 {offsets = [0, 7], sizes = [16, 1], strides = [1, 1]} : vector<16x8xf32> to vector<16x1xf32>
    %166 = vector.broadcast %164 : vector<1x128xf32> to vector<16x128xf32>
    %167 = vector.broadcast %165 : vector<16x1xf32> to vector<16x128xf32>
    %168 = arith.mulf %166, %167 : vector<16x128xf32>
    %c0_48 = arith.constant 0 : index
    %c0_49 = arith.constant 0 : index
    %169 = vector.load %arg16[%c0_48, %c0_49] : memref<16x128xf32, #tpu.memory_space<vmem>>, vector<16x128xf32>
    %170 = arith.mulf %100, %169 : vector<16x128xf32>
    %171 = arith.addf %170, %133 : vector<16x128xf32>
    %172 = vector.extract_strided_slice %94 {offsets = [0, 0], sizes = [16, 1], strides = [1, 1]} : vector<16x8xf32> to vector<16x1xf32>
    %173 = vector.broadcast %172 : vector<16x1xf32> to vector<16x128xf32>
    %174 = arith.mulf %171, %173 : vector<16x128xf32>
    %cst_50 = arith.constant dense<0.000000e+00> : vector<128xf32>
    %175 = vector.multi_reduction <add>, %174, %cst_50 [0] : vector<16x128xf32> to vector<128xf32>
    %176 = vector.shape_cast %175 : vector<128xf32> to vector<1x128xf32>
    %177 = arith.mulf %104, %171 : vector<16x128xf32>
    %178 = arith.addf %177, %138 : vector<16x128xf32>
    %179 = vector.extract_strided_slice %94 {offsets = [0, 1], sizes = [16, 1], strides = [1, 1]} : vector<16x8xf32> to vector<16x1xf32>
    %180 = vector.broadcast %179 : vector<16x1xf32> to vector<16x128xf32>
    %181 = arith.mulf %178, %180 : vector<16x128xf32>
    %cst_51 = arith.constant dense<0.000000e+00> : vector<128xf32>
    %182 = vector.multi_reduction <add>, %181, %cst_51 [0] : vector<16x128xf32> to vector<128xf32>
    %183 = vector.shape_cast %182 : vector<128xf32> to vector<1x128xf32>
    %184 = arith.mulf %108, %178 : vector<16x128xf32>
    %185 = arith.addf %184, %143 : vector<16x128xf32>
    %186 = vector.extract_strided_slice %94 {offsets = [0, 2], sizes = [16, 1], strides = [1, 1]} : vector<16x8xf32> to vector<16x1xf32>
    %187 = vector.broadcast %186 : vector<16x1xf32> to vector<16x128xf32>
    %188 = arith.mulf %185, %187 : vector<16x128xf32>
    %cst_52 = arith.constant dense<0.000000e+00> : vector<128xf32>
    %189 = vector.multi_reduction <add>, %188, %cst_52 [0] : vector<16x128xf32> to vector<128xf32>
    %190 = vector.shape_cast %189 : vector<128xf32> to vector<1x128xf32>
    %191 = arith.mulf %112, %185 : vector<16x128xf32>
    %192 = arith.addf %191, %148 : vector<16x128xf32>
    %193 = vector.extract_strided_slice %94 {offsets = [0, 3], sizes = [16, 1], strides = [1, 1]} : vector<16x8xf32> to vector<16x1xf32>
    %194 = vector.broadcast %193 : vector<16x1xf32> to vector<16x128xf32>
    %195 = arith.mulf %192, %194 : vector<16x128xf32>
    %cst_53 = arith.constant dense<0.000000e+00> : vector<128xf32>
    %196 = vector.multi_reduction <add>, %195, %cst_53 [0] : vector<16x128xf32> to vector<128xf32>
    %197 = vector.shape_cast %196 : vector<128xf32> to vector<1x128xf32>
    %198 = arith.mulf %116, %192 : vector<16x128xf32>
    %199 = arith.addf %198, %153 : vector<16x128xf32>
    %200 = vector.extract_strided_slice %94 {offsets = [0, 4], sizes = [16, 1], strides = [1, 1]} : vector<16x8xf32> to vector<16x1xf32>
    %201 = vector.broadcast %200 : vector<16x1xf32> to vector<16x128xf32>
    %202 = arith.mulf %199, %201 : vector<16x128xf32>
    %cst_54 = arith.constant dense<0.000000e+00> : vector<128xf32>
    %203 = vector.multi_reduction <add>, %202, %cst_54 [0] : vector<16x128xf32> to vector<128xf32>
    %204 = vector.shape_cast %203 : vector<128xf32> to vector<1x128xf32>
    %205 = arith.mulf %120, %199 : vector<16x128xf32>
    %206 = arith.addf %205, %158 : vector<16x128xf32>
    %207 = vector.extract_strided_slice %94 {offsets = [0, 5], sizes = [16, 1], strides = [1, 1]} : vector<16x8xf32> to vector<16x1xf32>
    %208 = vector.broadcast %207 : vector<16x1xf32> to vector<16x128xf32>
    %209 = arith.mulf %206, %208 : vector<16x128xf32>
    %cst_55 = arith.constant dense<0.000000e+00> : vector<128xf32>
    %210 = vector.multi_reduction <add>, %209, %cst_55 [0] : vector<16x128xf32> to vector<128xf32>
    %211 = vector.shape_cast %210 : vector<128xf32> to vector<1x128xf32>
    %212 = arith.mulf %124, %206 : vector<16x128xf32>
    %213 = arith.addf %212, %163 : vector<16x128xf32>
    %214 = vector.extract_strided_slice %94 {offsets = [0, 6], sizes = [16, 1], strides = [1, 1]} : vector<16x8xf32> to vector<16x1xf32>
    %215 = vector.broadcast %214 : vector<16x1xf32> to vector<16x128xf32>
    %216 = arith.mulf %213, %215 : vector<16x128xf32>
    %cst_56 = arith.constant dense<0.000000e+00> : vector<128xf32>
    %217 = vector.multi_reduction <add>, %216, %cst_56 [0] : vector<16x128xf32> to vector<128xf32>
    %218 = vector.shape_cast %217 : vector<128xf32> to vector<1x128xf32>
    %219 = arith.mulf %128, %213 : vector<16x128xf32>
    %220 = arith.addf %219, %168 : vector<16x128xf32>
    %221 = vector.extract_strided_slice %94 {offsets = [0, 7], sizes = [16, 1], strides = [1, 1]} : vector<16x8xf32> to vector<16x1xf32>
    %222 = vector.broadcast %221 : vector<16x1xf32> to vector<16x128xf32>
    %223 = arith.mulf %220, %222 : vector<16x128xf32>
    %cst_57 = arith.constant dense<0.000000e+00> : vector<128xf32>
    %224 = vector.multi_reduction <add>, %223, %cst_57 [0] : vector<16x128xf32> to vector<128xf32>
    %225 = vector.shape_cast %224 : vector<128xf32> to vector<1x128xf32>
    %c0_58 = arith.constant 0 : index
    %c0_59 = arith.constant 0 : index
    %226 = vector.load %arg16[%c0_58, %c0_59] : memref<16x128xf32, #tpu.memory_space<vmem>>, vector<16x128xf32>
    tpu.vector_store %arg16[%c0_58, %c0_59], %220 {strides = array<i32>} : memref<16x128xf32, #tpu.memory_space<vmem>>, vector<16x128xf32>,
    %227 = tpu.concatenate %176, %183, %190, %197, %204, %211, %218, %225 in 0 : vector<1x128xf32>, vector<1x128xf32>, vector<1x128xf32>, vector<1x128xf32>, vector<1x128xf32>, vector<1x128xf32>, vector<1x128xf32>, vector<1x128xf32> -> vector<8x128xf32>
    %c0_60 = arith.constant 0 : index
    %c0_61 = arith.constant 0 : index
    %228 = vector.load %arg13[%c0_60, %c0_61] : memref<1x128xf32, #tpu.memory_space<vmem>>, vector<1x128xf32>
    %229 = vector.broadcast %228 : vector<1x128xf32> to vector<8x128xf32>
    %230 = arith.mulf %229, %71 : vector<8x128xf32>
    %231 = arith.addf %227, %230 : vector<8x128xf32>
    %cst_62 = arith.constant 0.000000e+00 : f32
    %232 = vector.broadcast %cst_62 : f32 to vector<8x128xf32>
    %233 = arith.subf %232, %36 : vector<8x128xf32>
    %234 = math.exp %233 : vector<8x128xf32>
    %cst_63 = arith.constant 1.000000e+00 : f32
    %235 = vector.broadcast %cst_63 : f32 to vector<8x128xf32>
    %236 = arith.addf %235, %234 : vector<8x128xf32>
    %237 = tpu.reciprocal %236 {approx = true} : vector<8x128xf32> -> vector<8x128xf32>
    %238 = arith.mulf %36, %237 : vector<8x128xf32>
    %239 = arith.mulf %231, %238 : vector<8x128xf32>
    %240 = arith.truncf %239 : vector<8x128xf32> to vector<8x128xbf16>
    %c0_64 = arith.constant 0 : index
    %c0_65 = arith.constant 0 : index
    %241 = vector.load %arg14[%c0_64, %c0_65] : memref<128x128xbf16, #tpu.memory_space<vmem>>, vector<128x128xbf16>
    %cst_66 = arith.constant dense<0.000000e+00> : vector<8x128xf32>
    %242 = tpu.matmul %240, %241, %cst_66 {dimension_numbers = #tpu.dot_dimension_numbers<[1], [0], [0], [1], [0, 0, 1, 1], [], []>} : vector<8x128xbf16>, vector<128x128xbf16>, vector<8x128xf32> -> vector<8x128xf32>
    %243 = arith.addf %1, %242 : vector<8x128xf32>
    %c0_67 = arith.constant 0 : index
    %c0_68 = arith.constant 0 : index
    %c0_69 = arith.constant 0 : index
    %244 = vector.load %arg15[%c0_67, %c0_68, %c0_69] : memref<1x8x128xf32, #tpu.memory_space<vmem>>, vector<1x8x128xf32>
    %245 = vector.shape_cast %244 : vector<1x8x128xf32> to vector<8x128xf32>
    %246 = vector.shape_cast %243 : vector<8x128xf32> to vector<1x8x128xf32>
    tpu.vector_store %arg15[%c0_67, %c0_68, %c0_69], %246 {strides = array<i32>} : memref<1x8x128xf32, #tpu.memory_space<vmem>>, vector<1x8x128xf32>,
    return
  }
  func.func @transform_0(%arg0: i32, %arg1: i32) -> (i32, i32, i32) {
    %c0_i32 = arith.constant 0 : i32
    %c0_i32_0 = arith.constant 0 : i32
    return %arg0, %arg1, %c0_i32 : i32, i32, i32
  }
  func.func @transform_1(%arg0: i32, %arg1: i32) -> (i32, i32) {
    %c0_i32 = arith.constant 0 : i32
    %c0_i32_0 = arith.constant 0 : i32
    %c0_i32_1 = arith.constant 0 : i32
    return %c0_i32, %c0_i32_0 : i32, i32
  }
  func.func @transform_2(%arg0: i32, %arg1: i32) -> (i32, i32) {
    %c0_i32 = arith.constant 0 : i32
    %c0_i32_0 = arith.constant 0 : i32
    %c0_i32_1 = arith.constant 0 : i32
    return %c0_i32, %c0_i32_0 : i32, i32
  }
  func.func @transform_3(%arg0: i32, %arg1: i32) -> (i32, i32) {
    %c0_i32 = arith.constant 0 : i32
    %c0_i32_0 = arith.constant 0 : i32
    %c0_i32_1 = arith.constant 0 : i32
    return %c0_i32, %c0_i32_0 : i32, i32
  }
  func.func @transform_4(%arg0: i32, %arg1: i32) -> (i32, i32) {
    %c0_i32 = arith.constant 0 : i32
    %c0_i32_0 = arith.constant 0 : i32
    %c0_i32_1 = arith.constant 0 : i32
    return %c0_i32, %c0_i32_0 : i32, i32
  }
  func.func @transform_5(%arg0: i32, %arg1: i32) -> (i32, i32) {
    %c0_i32 = arith.constant 0 : i32
    %c0_i32_0 = arith.constant 0 : i32
    %c0_i32_1 = arith.constant 0 : i32
    return %c0_i32, %c0_i32_0 : i32, i32
  }
  func.func @transform_6(%arg0: i32, %arg1: i32) -> (i32, i32) {
    %c0_i32 = arith.constant 0 : i32
    %c0_i32_0 = arith.constant 0 : i32
    %c0_i32_1 = arith.constant 0 : i32
    return %c0_i32, %c0_i32_0 : i32, i32
  }
  func.func @transform_7(%arg0: i32, %arg1: i32) -> (i32, i32) {
    %c0_i32 = arith.constant 0 : i32
    %c0_i32_0 = arith.constant 0 : i32
    %c0_i32_1 = arith.constant 0 : i32
    return %c0_i32, %c0_i32_0 : i32, i32
  }
  func.func @transform_8(%arg0: i32, %arg1: i32) -> (i32, i32) {
    %c0_i32 = arith.constant 0 : i32
    %c0_i32_0 = arith.constant 0 : i32
    %c0_i32_1 = arith.constant 0 : i32
    return %c0_i32, %c0_i32_0 : i32, i32
  }
  func.func @transform_9(%arg0: i32, %arg1: i32) -> (i32, i32) {
    %c0_i32 = arith.constant 0 : i32
    %c0_i32_0 = arith.constant 0 : i32
    %c0_i32_1 = arith.constant 0 : i32
    return %c0_i32, %c0_i32_0 : i32, i32
  }
  func.func @transform_10(%arg0: i32, %arg1: i32) -> (i32, i32) {
    %c0_i32 = arith.constant 0 : i32
    %c0_i32_0 = arith.constant 0 : i32
    %c0_i32_1 = arith.constant 0 : i32
    return %c0_i32, %c0_i32_0 : i32, i32
  }
  func.func @transform_11(%arg0: i32, %arg1: i32) -> (i32, i32) {
    %c0_i32 = arith.constant 0 : i32
    %c0_i32_0 = arith.constant 0 : i32
    %c0_i32_1 = arith.constant 0 : i32
    return %c0_i32, %c0_i32_0 : i32, i32
  }
  func.func @transform_12(%arg0: i32, %arg1: i32) -> (i32, i32) {
    %c0_i32 = arith.constant 0 : i32
    %c0_i32_0 = arith.constant 0 : i32
    %c0_i32_1 = arith.constant 0 : i32
    return %c0_i32, %c0_i32_0 : i32, i32
  }
  func.func @transform_13(%arg0: i32, %arg1: i32) -> (i32, i32, i32) {
    %c0_i32 = arith.constant 0 : i32
    %c0_i32_0 = arith.constant 0 : i32
    return %arg0, %arg1, %c0_i32 : i32, i32, i32
  }
}

</mosaic_0001>

<llo_original>
// kernel: mamba_block_forward.1
$region0: #{mamba_block_forward.1}
  #allocation0 [shape = 'u32[]', space=smem, size = 0x4, offset = 0x4, fixed_abs, tag = 'smem constant byte address 0x4 - core index']
  #allocation1 [shape = 'u32[72,128]{1,0:T(1,128)}', space=vmem, size = 0x9000, scoped, tag = 'internal scratch']
  #allocation2 [shape = 'f32[16,128]{1,0:T(8,128)}', space=vmem, size = 0x2000, scoped, tag = 'scratch operand']
  #allocation3 [shape = 'f32[16,128]{1,0:T(8,128)}', space=vmem, size = 0x2000, scoped, tag = 'scratch operand']
  %s0 = inlined_call_operand.vmem [shape: f32[2,16,128], index: 0, kind: input, shape index: {}]
  %s1 = inlined_call_operand.vmem [shape: f32[1,128], index: 1, kind: input, shape index: {}]
  %s2 = inlined_call_operand.vmem [shape: f32[1,128], index: 2, kind: input, shape index: {}]
  %s3 = inlined_call_operand.vmem [shape: bf16[128,256], index: 3, kind: input, shape index: {}]
  %s4 = inlined_call_operand.vmem [shape: f32[4,128], index: 4, kind: input, shape index: {}]
  %s5 = inlined_call_operand.vmem [shape: f32[1,128], index: 5, kind: input, shape index: {}]
  %s6 = inlined_call_operand.vmem [shape: bf16[128,128], index: 6, kind: input, shape index: {}]
  %s7 = inlined_call_operand.vmem [shape: bf16[128,128], index: 7, kind: input, shape index: {}]
  %s8 = inlined_call_operand.vmem [shape: f32[1,128], index: 8, kind: input, shape index: {}]
  %s9 = inlined_call_operand.vmem [shape: bf16[32,128], index: 9, kind: input, shape index: {}]
  %s10 = inlined_call_operand.vmem [shape: f32[16,128], index: 10, kind: input, shape index: {}]
  %s11 = inlined_call_operand.vmem [shape: f32[1,128], index: 11, kind: input, shape index: {}]
  %s12 = inlined_call_operand.vmem [shape: bf16[128,128], index: 12, kind: input, shape index: {}]
  %s13 = inlined_call_operand.hbm [shape: f32[2,16,128], index: 13, kind: output, shape index: {}]
  %s14 = sld [smem:[#allocation0]]
  $region89: #{mamba_block_forward.1} parent=0
    _
  %s16 = ssub.s32 1, %s14
  %s17 = scalar_select 0, %s16, %s14
  $region1: #{mamba_block_forward.1} parent=0
    #allocation4 [shape = 'u8[8192]{0}', space=vmem, size = 0x2000, scoped, tag = 'output window, operand 0']
    #allocation5 [shape = 's32[2]{0}', space=sflag, size = 0x8, scoped, tag = 'scoped memory for mamba_block_forward.1']
    %18 = vsyncpa [#allocation5], 0
    %s19 = scalar_lea.sflag [#allocation5], 1
    %20 = vsyncpa %s19, 0
    loop: start=0, step=1, limit=6
    $region2: #{mamba_block_forward.1} parent=1 // loop_pre_header
      _
    $region3: #{mamba_block_forward.1} parent=1 // loop_header
      %s22 = sphi 0, %s26
      %p23 = scmp.ge.s32.totalorder %s22, 6
      %s29 = sphi 0, %s41
      %s30 = sphi 0, %s37
      %s31 = sphi 0, %s29
      %s32 = sphi 0, %s30
      %s33 = sphi 0, %s31
      %s34 = sphi 0, %s32
      %s46 = sphi 0, %s48
      %s49 = sphi 0, %s46
      %s50 = sphi 0, %s49
      %s66 = sphi 0, %s50
      %s70 = sphi 0, %s70
      %s72 = sphi 0, %s70
      %s73 = sphi 0, %s72
      %s87 = sphi 0, %s73
      %s91 = sphi 0, %s91
      %s93 = sphi 0, %s91
      %s94 = sphi 0, %s93
      %s108 = sphi 0, %s94
      %s112 = sphi 0, %s112
      %s114 = sphi 0, %s112
      %s115 = sphi 0, %s114
      %s129 = sphi 0, %s115
      %s133 = sphi 0, %s133
      %s135 = sphi 0, %s133
      %s136 = sphi 0, %s135
      %s150 = sphi 0, %s136
      %s154 = sphi 0, %s154
      %s156 = sphi 0, %s154
      %s157 = sphi 0, %s156
      %s171 = sphi 0, %s157
      %s175 = sphi 0, %s175
      %s177 = sphi 0, %s175
      %s178 = sphi 0, %s177
      %s192 = sphi 0, %s178
      %s196 = sphi 0, %s196
      %s198 = sphi 0, %s196
      %s199 = sphi 0, %s198
      %s213 = sphi 0, %s199
      %s217 = sphi 0, %s217
      %s219 = sphi 0, %s217
      %s220 = sphi 0, %s219
      %s234 = sphi 0, %s220
      %s238 = sphi 0, %s238
      %s240 = sphi 0, %s238
      %s241 = sphi 0, %s240
      %s255 = sphi 0, %s241
      %s259 = sphi 0, %s259
      %s261 = sphi 0, %s259
      %s262 = sphi 0, %s261
      %s276 = sphi 0, %s262
      %s280 = sphi 0, %s280
      %s282 = sphi 0, %s280
      %s283 = sphi 0, %s282
      %s297 = sphi 0, %s283
      %s301 = sphi 0, %s301
      %s303 = sphi 0, %s301
      %s304 = sphi 0, %s303
      %s318 = sphi 0, %s304
      %s326 = sphi 0, %s328
      %s329 = sphi 0, %s326
      %s330 = sphi 0, %s329
      %s346 = sphi 0, %s330
    $region4: #{mamba_block_forward.1} parent=1 // loop_header_branch
      %25 = sbr.rel (%p23) target = $region8
    $region5: #{mamba_block_forward.1} parent=1 // loop_body
      %s27 = ssub.s32 %s22, 1
      %s28 = ssub.s32 %s22, 2
      %s35 = sadd.s32 1, %s30
      %p36 = scmp.ge.s32.totalorder %s35, 2
      %s37 = scalar_select %p36, 0, %s35
      %s38 = sadd.s32 1, %s29
      %s39 = scalar_select %p36, %s38, %s29
      %p40 = scmp.ge.s32.totalorder %s39, 2
      %s41 = scalar_select %p40, 0, %s39
      %s42 = ssub.s32 %s29, %s41
      %s43 = ssub.s32 %s30, %s37
      %s44 = sor.u32 %s42, %s43
      %p45 = scmp.eq.s32.totalorder %s44, 0
      %s47 = sadd.s32 %s46, 1
      %s48 = scalar_select %p45, %s46, %s47
      %p51 = pneg %p45
      %p52 = scmp.eq.s32.totalorder %s22, 3
      %p53 = por %p51, %p52
      %p54 = scmp.ne.s32.totalorder %s46, %s49
      %p55 = scmp.eq.s32.totalorder %s22, 0
      %p56 = por %p54, %p55
      %p57 = scmp.ne.s32.totalorder %s46, %s49
      %p58 = scmp.eq.s32.totalorder %s27, 3
      %p59 = por %p57, %p58
      %p60 = scmp.ne.s32.totalorder %s49, %s50
      %p61 = scmp.eq.s32.totalorder %s27, 0
      %p62 = por %p60, %p61
      %p63 = scmp.ne.s32.totalorder %s49, %s50
      %p64 = scmp.eq.s32.totalorder %s28, 3
      %p65 = por %p63, %p64
      %p67 = scmp.ne.s32.totalorder %s50, %s66
      %p68 = scmp.eq.s32.totalorder %s28, 0
      %p69 = por %p67, %p68
      %s71 = sadd.s32 %s70, 1
      %p74 = scmp.eq.s32.totalorder %s22, 3
      %p75 = scmp.ne.s32.totalorder %s70, %s72
      %p76 = scmp.eq.s32.totalorder %s22, 0
      %p77 = por %p75, %p76
      %p78 = scmp.ne.s32.totalorder %s70, %s72
      %p79 = scmp.eq.s32.totalorder %s27, 3
      %p80 = por %p78, %p79
      %p81 = scmp.ne.s32.totalorder %s72, %s73
      %p82 = scmp.eq.s32.totalorder %s27, 0
      %p83 = por %p81, %p82
      %p84 = scmp.ne.s32.totalorder %s72, %s73
      %p85 = scmp.eq.s32.totalorder %s28, 3
      %p86 = por %p84, %p85
      %p88 = scmp.ne.s32.totalorder %s73, %s87
      %p89 = scmp.eq.s32.totalorder %s28, 0
      %p90 = por %p88, %p89
      %s92 = sadd.s32 %s91, 1
      %p95 = scmp.eq.s32.totalorder %s22, 3
      %p96 = scmp.ne.s32.totalorder %s91, %s93
      %p97 = scmp.eq.s32.totalorder %s22, 0
      %p98 = por %p96, %p97
      %p99 = scmp.ne.s32.totalorder %s91, %s93
      %p100 = scmp.eq.s32.totalorder %s27, 3
      %p101 = por %p99, %p100
      %p102 = scmp.ne.s32.totalorder %s93, %s94
      %p103 = scmp.eq.s32.totalorder %s27, 0
      %p104 = por %p102, %p103
      %p105 = scmp.ne.s32.totalorder %s93, %s94
      %p106 = scmp.eq.s32.totalorder %s28, 3
      %p107 = por %p105, %p106
      %p109 = scmp.ne.s32.totalorder %s94, %s108
      %p110 = scmp.eq.s32.totalorder %s28, 0
      %p111 = por %p109, %p110
      %s113 = sadd.s32 %s112, 1
      %p116 = scmp.eq.s32.totalorder %s22, 3
      %p117 = scmp.ne.s32.totalorder %s112, %s114
      %p118 = scmp.eq.s32.totalorder %s22, 0
      %p119 = por %p117, %p118
      %p120 = scmp.ne.s32.totalorder %s112, %s114
      %p121 = scmp.eq.s32.totalorder %s27, 3
      %p122 = por %p120, %p121
      %p123 = scmp.ne.s32.totalorder %s114, %s115
      %p124 = scmp.eq.s32.totalorder %s27, 0
      %p125 = por %p123, %p124
      %p126 = scmp.ne.s32.totalorder %s114, %s115
      %p127 = scmp.eq.s32.totalorder %s28, 3
      %p128 = por %p126, %p127
      %p130 = scmp.ne.s32.totalorder %s115, %s129
      %p131 = scmp.eq.s32.totalorder %s28, 0
      %p132 = por %p130, %p131
      %s134 = sadd.s32 %s133, 1
      %p137 = scmp.eq.s32.totalorder %s22, 3
      %p138 = scmp.ne.s32.totalorder %s133, %s135
      %p139 = scmp.eq.s32.totalorder %s22, 0
      %p140 = por %p138, %p139
      %p141 = scmp.ne.s32.totalorder %s133, %s135
      %p142 = scmp.eq.s32.totalorder %s27, 3
      %p143 = por %p141, %p142
      %p144 = scmp.ne.s32.totalorder %s135, %s136
      %p145 = scmp.eq.s32.totalorder %s27, 0
      %p146 = por %p144, %p145
      %p147 = scmp.ne.s32.totalorder %s135, %s136
      %p148 = scmp.eq.s32.totalorder %s28, 3
      %p149 = por %p147, %p148
      %p151 = scmp.ne.s32.totalorder %s136, %s150
      %p152 = scmp.eq.s32.totalorder %s28, 0
      %p153 = por %p151, %p152
      %s155 = sadd.s32 %s154, 1
      %p158 = scmp.eq.s32.totalorder %s22, 3
      %p159 = scmp.ne.s32.totalorder %s154, %s156
      %p160 = scmp.eq.s32.totalorder %s22, 0
      %p161 = por %p159, %p160
      %p162 = scmp.ne.s32.totalorder %s154, %s156
      %p163 = scmp.eq.s32.totalorder %s27, 3
      %p164 = por %p162, %p163
      %p165 = scmp.ne.s32.totalorder %s156, %s157
      %p166 = scmp.eq.s32.totalorder %s27, 0
      %p167 = por %p165, %p166
      %p168 = scmp.ne.s32.totalorder %s156, %s157
      %p169 = scmp.eq.s32.totalorder %s28, 3
      %p170 = por %p168, %p169
      %p172 = scmp.ne.s32.totalorder %s157, %s171
      %p173 = scmp.eq.s32.totalorder %s28, 0
      %p174 = por %p172, %p173
      %s176 = sadd.s32 %s175, 1
      %p179 = scmp.eq.s32.totalorder %s22, 3
      %p180 = scmp.ne.s32.totalorder %s175, %s177
      %p181 = scmp.eq.s32.totalorder %s22, 0
      %p182 = por %p180, %p181
      %p183 = scmp.ne.s32.totalorder %s175, %s177
      %p184 = scmp.eq.s32.totalorder %s27, 3
      %p185 = por %p183, %p184
      %p186 = scmp.ne.s32.totalorder %s177, %s178
      %p187 = scmp.eq.s32.totalorder %s27, 0
      %p188 = por %p186, %p187
      %p189 = scmp.ne.s32.totalorder %s177, %s178
      %p190 = scmp.eq.s32.totalorder %s28, 3
      %p191 = por %p189, %p190
      %p193 = scmp.ne.s32.totalorder %s178, %s192
      %p194 = scmp.eq.s32.totalorder %s28, 0
      %p195 = por %p193, %p194
      %s197 = sadd.s32 %s196, 1
      %p200 = scmp.eq.s32.totalorder %s22, 3
      %p201 = scmp.ne.s32.totalorder %s196, %s198
      %p202 = scmp.eq.s32.totalorder %s22, 0
      %p203 = por %p201, %p202
      %p204 = scmp.ne.s32.totalorder %s196, %s198
      %p205 = scmp.eq.s32.totalorder %s27, 3
      %p206 = por %p204, %p205
      %p207 = scmp.ne.s32.totalorder %s198, %s199
      %p208 = scmp.eq.s32.totalorder %s27, 0
      %p209 = por %p207, %p208
      %p210 = scmp.ne.s32.totalorder %s198, %s199
      %p211 = scmp.eq.s32.totalorder %s28, 3
      %p212 = por %p210, %p211
      %p214 = scmp.ne.s32.totalorder %s199, %s213
      %p215 = scmp.eq.s32.totalorder %s28, 0
      %p216 = por %p214, %p215
      %s218 = sadd.s32 %s217, 1
      %p221 = scmp.eq.s32.totalorder %s22, 3
      %p222 = scmp.ne.s32.totalorder %s217, %s219
      %p223 = scmp.eq.s32.totalorder %s22, 0
      %p224 = por %p222, %p223
      %p225 = scmp.ne.s32.totalorder %s217, %s219
      %p226 = scmp.eq.s32.totalorder %s27, 3
      %p227 = por %p225, %p226
      %p228 = scmp.ne.s32.totalorder %s219, %s220
      %p229 = scmp.eq.s32.totalorder %s27, 0
      %p230 = por %p228, %p229
      %p231 = scmp.ne.s32.totalorder %s219, %s220
      %p232 = scmp.eq.s32.totalorder %s28, 3
      %p233 = por %p231, %p232
      %p235 = scmp.ne.s32.totalorder %s220, %s234
      %p236 = scmp.eq.s32.totalorder %s28, 0
      %p237 = por %p235, %p236
      %s239 = sadd.s32 %s238, 1
      %p242 = scmp.eq.s32.totalorder %s22, 3
      %p243 = scmp.ne.s32.totalorder %s238, %s240
      %p244 = scmp.eq.s32.totalorder %s22, 0
      %p245 = por %p243, %p244
      %p246 = scmp.ne.s32.totalorder %s238, %s240
      %p247 = scmp.eq.s32.totalorder %s27, 3
      %p248 = por %p246, %p247
      %p249 = scmp.ne.s32.totalorder %s240, %s241
      %p250 = scmp.eq.s32.totalorder %s27, 0
      %p251 = por %p249, %p250
      %p252 = scmp.ne.s32.totalorder %s240, %s241
      %p253 = scmp.eq.s32.totalorder %s28, 3
      %p254 = por %p252, %p253
      %p256 = scmp.ne.s32.totalorder %s241, %s255
      %p257 = scmp.eq.s32.totalorder %s28, 0
      %p258 = por %p256, %p257
      %s260 = sadd.s32 %s259, 1
      %p263 = scmp.eq.s32.totalorder %s22, 3
      %p264 = scmp.ne.s32.totalorder %s259, %s261
      %p265 = scmp.eq.s32.totalorder %s22, 0
      %p266 = por %p264, %p265
      %p267 = scmp.ne.s32.totalorder %s259, %s261
      %p268 = scmp.eq.s32.totalorder %s27, 3
      %p269 = por %p267, %p268
      %p270 = scmp.ne.s32.totalorder %s261, %s262
      %p271 = scmp.eq.s32.totalorder %s27, 0
      %p272 = por %p270, %p271
      %p273 = scmp.ne.s32.totalorder %s261, %s262
      %p274 = scmp.eq.s32.totalorder %s28, 3
      %p275 = por %p273, %p274
      %p277 = scmp.ne.s32.totalorder %s262, %s276
      %p278 = scmp.eq.s32.totalorder %s28, 0
      %p279 = por %p277, %p278
      %s281 = sadd.s32 %s280, 1
      %p284 = scmp.eq.s32.totalorder %s22, 3
      %p285 = scmp.ne.s32.totalorder %s280, %s282
      %p286 = scmp.eq.s32.totalorder %s22, 0
      %p287 = por %p285, %p286
      %p288 = scmp.ne.s32.totalorder %s280, %s282
      %p289 = scmp.eq.s32.totalorder %s27, 3
      %p290 = por %p288, %p289
      %p291 = scmp.ne.s32.totalorder %s282, %s283
      %p292 = scmp.eq.s32.totalorder %s27, 0
      %p293 = por %p291, %p292
      %p294 = scmp.ne.s32.totalorder %s282, %s283
      %p295 = scmp.eq.s32.totalorder %s28, 3
      %p296 = por %p294, %p295
      %p298 = scmp.ne.s32.totalorder %s283, %s297
      %p299 = scmp.eq.s32.totalorder %s28, 0
      %p300 = por %p298, %p299
      %s302 = sadd.s32 %s301, 1
      %p305 = scmp.eq.s32.totalorder %s22, 3
      %p306 = scmp.ne.s32.totalorder %s301, %s303
      %p307 = scmp.eq.s32.totalorder %s22, 0
      %p308 = por %p306, %p307
      %p309 = scmp.ne.s32.totalorder %s301, %s303
      %p310 = scmp.eq.s32.totalorder %s27, 3
      %p311 = por %p309, %p310
      %p312 = scmp.ne.s32.totalorder %s303, %s304
      %p313 = scmp.eq.s32.totalorder %s27, 0
      %p314 = por %p312, %p313
      %p315 = scmp.ne.s32.totalorder %s303, %s304
      %p316 = scmp.eq.s32.totalorder %s28, 3
      %p317 = por %p315, %p316
      %p319 = scmp.ne.s32.totalorder %s304, %s318
      %p320 = scmp.eq.s32.totalorder %s28, 0
      %p321 = por %p319, %p320
      %s322 = ssub.s32 %s29, %s41
      %s323 = ssub.s32 %s30, %s37
      %s324 = sor.u32 %s322, %s323
      %p325 = scmp.eq.s32.totalorder %s324, 0
      %s327 = sadd.s32 %s326, 1
      %s328 = scalar_select %p325, %s326, %s327
      %p331 = pneg %p325
      %p332 = scmp.eq.s32.totalorder %s22, 3
      %p333 = por %p331, %p332
      %p334 = scmp.ne.s32.totalorder %s326, %s329
      %p335 = scmp.eq.s32.totalorder %s22, 0
      %p336 = por %p334, %p335
      %p337 = scmp.ne.s32.totalorder %s326, %s329
      %p338 = scmp.eq.s32.totalorder %s27, 3
      %p339 = por %p337, %p338
      %p340 = scmp.ne.s32.totalorder %s329, %s330
      %p341 = scmp.eq.s32.totalorder %s27, 0
      %p342 = por %p340, %p341
      %p343 = scmp.ne.s32.totalorder %s329, %s330
      %p344 = scmp.eq.s32.totalorder %s28, 3
      %p345 = por %p343, %p344
      %p347 = scmp.ne.s32.totalorder %s330, %s346
      %p348 = scmp.eq.s32.totalorder %s28, 0
      %p349 = por %p347, %p348
      %p350 = scmp.le.s32.totalorder 1, %s22
      %p351 = scmp.lt.s32.totalorder %s22, 5
      %p352 = pnand %p350, %p351
      %p353 = pneg %p352
      // Predicated region
      $region9: #{mamba_block_forward.1} parent=5 // pred_check
        _
      $region10: #{mamba_block_forward.1} parent=5 // pred_check_branch
        %355 = sbr.rel (%p352) target = $region12
      $region11: #{mamba_block_forward.1} parent=5 // pred_region
        %s356 = ssub.s32 %s22, 1
        // Predicated region
        $region13: #{mamba_block_forward.1} parent=11 // pred_check
          %p357 = pneg %p83
        $region14: #{mamba_block_forward.1} parent=11 // pred_check_branch
          %359 = sbr.rel (%p357) target = $region16
        $region15: #{mamba_block_forward.1} parent=11 // pred_region
          _
        $region16: #{mamba_block_forward.1} parent=11 // pred_fallthru
          _
        // Predicated region
        $region17: #{mamba_block_forward.1} parent=11 // pred_check
          %p360 = pneg %p104
        $region18: #{mamba_block_forward.1} parent=11 // pred_check_branch
          %362 = sbr.rel (%p360) target = $region20
        $region19: #{mamba_block_forward.1} parent=11 // pred_region
          _
        $region20: #{mamba_block_forward.1} parent=11 // pred_fallthru
          _
        // Predicated region
        $region21: #{mamba_block_forward.1} parent=11 // pred_check
          %p363 = pneg %p125
        $region22: #{mamba_block_forward.1} parent=11 // pred_check_branch
          %365 = sbr.rel (%p363) target = $region24
        $region23: #{mamba_block_forward.1} parent=11 // pred_region
          _
        $region24: #{mamba_block_forward.1} parent=11 // pred_fallthru
          _
        // Predicated region
        $region25: #{mamba_block_forward.1} parent=11 // pred_check
          %p366 = pneg %p146
        $region26: #{mamba_block_forward.1} parent=11 // pred_check_branch
          %368 = sbr.rel (%p366) target = $region28
        $region27: #{mamba_block_forward.1} parent=11 // pred_region
          _
        $region28: #{mamba_block_forward.1} parent=11 // pred_fallthru
          _
        // Predicated region
        $region29: #{mamba_block_forward.1} parent=11 // pred_check
          %p369 = pneg %p167
        $region30: #{mamba_block_forward.1} parent=11 // pred_check_branch
          %371 = sbr.rel (%p369) target = $region32
        $region31: #{mamba_block_forward.1} parent=11 // pred_region
          _
        $region32: #{mamba_block_forward.1} parent=11 // pred_fallthru
          _
        // Predicated region
        $region33: #{mamba_block_forward.1} parent=11 // pred_check
          %p372 = pneg %p188
        $region34: #{mamba_block_forward.1} parent=11 // pred_check_branch
          %374 = sbr.rel (%p372) target = $region36
        $region35: #{mamba_block_forward.1} parent=11 // pred_region
          _
        $region36: #{mamba_block_forward.1} parent=11 // pred_fallthru
          _
        // Predicated region
        $region37: #{mamba_block_forward.1} parent=11 // pred_check
          %p375 = pneg %p209
        $region38: #{mamba_block_forward.1} parent=11 // pred_check_branch
          %377 = sbr.rel (%p375) target = $region40
        $region39: #{mamba_block_forward.1} parent=11 // pred_region
          _
        $region40: #{mamba_block_forward.1} parent=11 // pred_fallthru
          _
        // Predicated region
        $region41: #{mamba_block_forward.1} parent=11 // pred_check
          %p378 = pneg %p230
        $region42: #{mamba_block_forward.1} parent=11 // pred_check_branch
          %380 = sbr.rel (%p378) target = $region44
        $region43: #{mamba_block_forward.1} parent=11 // pred_region
          _
        $region44: #{mamba_block_forward.1} parent=11 // pred_fallthru
          _
        // Predicated region
        $region45: #{mamba_block_forward.1} parent=11 // pred_check
          %p381 = pneg %p251
        $region46: #{mamba_block_forward.1} parent=11 // pred_check_branch
          %383 = sbr.rel (%p381) target = $region48
        $region47: #{mamba_block_forward.1} parent=11 // pred_region
          _
        $region48: #{mamba_block_forward.1} parent=11 // pred_fallthru
          _
        // Predicated region
        $region49: #{mamba_block_forward.1} parent=11 // pred_check
          %p384 = pneg %p272
        $region50: #{mamba_block_forward.1} parent=11 // pred_check_branch
          %386 = sbr.rel (%p384) target = $region52
        $region51: #{mamba_block_forward.1} parent=11 // pred_region
          _
        $region52: #{mamba_block_forward.1} parent=11 // pred_fallthru
          _
        // Predicated region
        $region53: #{mamba_block_forward.1} parent=11 // pred_check
          %p387 = pneg %p293
        $region54: #{mamba_block_forward.1} parent=11 // pred_check_branch
          %389 = sbr.rel (%p387) target = $region56
        $region55: #{mamba_block_forward.1} parent=11 // pred_region
          _
        $region56: #{mamba_block_forward.1} parent=11 // pred_fallthru
          _
        // Predicated region
        $region57: #{mamba_block_forward.1} parent=11 // pred_check
          %p390 = pneg %p314
        $region58: #{mamba_block_forward.1} parent=11 // pred_check_branch
          %392 = sbr.rel (%p390) target = $region60
        $region59: #{mamba_block_forward.1} parent=11 // pred_region
          _
        $region60: #{mamba_block_forward.1} parent=11 // pred_fallthru
          _
      $region12: #{mamba_block_forward.1} parent=5 // pred_fallthru
        _
      %p393 = scmp.lt.s32.totalorder %s22, 4
      // Predicated region
      $region61: #{mamba_block_forward.1} parent=5 // pred_check
        %p394 = pneg %p393
      $region62: #{mamba_block_forward.1} parent=5 // pred_check_branch
        %396 = sbr.rel (%p394) target = $region64
      $region63: #{mamba_block_forward.1} parent=5 // pred_region
        // Predicated region
        $region65: #{mamba_block_forward.1} parent=63 // pred_check
          %p397 = pneg %p56
        $region66: #{mamba_block_forward.1} parent=63 // pred_check_branch
          %399 = sbr.rel (%p397) target = $region68
        $region67: #{mamba_block_forward.1} parent=63 // pred_region
          %p400 = scmp.lt.s32.totalorder %s29, 1
          %s401 = scalar_select %p400, %s29, 1
          %p402 = scmp.lt.s32.totalorder %s30, 1
          %s403 = scalar_select %p402, %s30, 1
          %s404 = smul.addr %s401, 2
          %s405 = sadd.s32 %s403, %s404
          %s406 = smul.addr %s405, 8
          %s407 = scalar_lea.vmem %s0, %s406
        $region68: #{mamba_block_forward.1} parent=63 // pred_fallthru
          _
      $region64: #{mamba_block_forward.1} parent=5 // pred_fallthru
        _
      %p408 = scmp.le.s32.totalorder 1, %s22
      %p409 = scmp.lt.s32.totalorder %s22, 5
      %p410 = pnand %p408, %p409
      %p411 = pneg %p410
      // Predicated region
      $region69: #{mamba_block_forward.1} parent=5 // pred_check
        _
      $region70: #{mamba_block_forward.1} parent=5 // pred_check_branch
        %413 = sbr.rel (%p410) target = $region72
      $region71: #{mamba_block_forward.1} parent=5 // pred_region
        %s414 = ssub.s32 %s22, 1
        %p415 = scmp.lt.s32.totalorder %s31, 1
        %s416 = scalar_select %p415, %s31, 1
        %p417 = scmp.lt.s32.totalorder %s32, 1
        %s418 = scalar_select %p417, %s32, 1
        %s419 = smul.addr %s416, 2
        %s420 = sadd.s32 %s418, %s419
        %s421 = smul.addr %s420, 8
        %s422 = scalar_lea.vmem %s0, %s421
        %p423 = pneg %p62
        %p424 = pneg %p59
        %p425 = pneg %p83
        %p426 = pneg %p80
        %p427 = pneg %p104
        %p428 = pneg %p101
        %p429 = pneg %p125
        %p430 = pneg %p122
        %p431 = pneg %p146
        %p432 = pneg %p143
        %p433 = pneg %p167
        %p434 = pneg %p164
        %p435 = pneg %p188
        %p436 = pneg %p185
        %p437 = pneg %p209
        %p438 = pneg %p206
        %p439 = pneg %p230
        %p440 = pneg %p227
        %p441 = pneg %p251
        %p442 = pneg %p248
        %p443 = pneg %p272
        %p444 = pneg %p269
        %p445 = pneg %p293
        %p446 = pneg %p290
        %p447 = pneg %p314
        %p448 = pneg %p311
        %p449 = pneg %p342
        %p450 = pneg %p339
        %s451 = sand.u32 %s329, 1
        %s452 = scalar_lea.sflag [#allocation5], %s451
        %s453 = sand.u32 %s329, 1
        %s454 = smul.addr %s453, 8
        %s455 = scalar_lea.vmem [#allocation4], %s454
        %p456 = scmp.lt.s32.totalorder %s31, 1
        %s457 = scalar_select %p456, %s31, 1
        %p458 = scmp.lt.s32.totalorder %s32, 1
        %s459 = scalar_select %p458, %s32, 1
        %s460 = smul.addr %s457, 2
        %s461 = sadd.s32 %s459, %s460
        %s462 = smul.addr %s461, 8
        %s463 = scalar_lea.vmem %s0, %s462
        %v465 = vld [vmem:[%s463] sm:$0xff]
        %p466 = scmp.eq.s32.totalorder %s32, 0
        // Predicated region
        $region73: #{mamba_block_forward.1} parent=71 // pred_check
          %p467 = pneg %p466
        $region74: #{mamba_block_forward.1} parent=71 // pred_check_branch
          %469 = sbr.rel (%p467) target = $region76
        $region75: #{mamba_block_forward.1} parent=71 // pred_region
          %470 = vst [vmem:[#allocation2] sm:$0xff] 0.0
          %471 = vst [vmem:[#allocation2 + $0x8] sm:$0xff] 0.0
          %472 = vst [vmem:[#allocation3] sm:$0xff] 0.0
        $region76: #{mamba_block_forward.1} parent=71 // pred_fallthru
          _
        %v473 = vlaneseq
        %v474 = vand.u32 %v473, 127
        %475 = vadd.xlane.f32.xlu0 %v465
        %v476 = vpop.xlane.xlu0 %475
        %v477 = vmul.f32 %v476, 0.03125
        %vm478 = vcmp.lt.s32.totalorder %v474, 32
        %v479 = vsub.f32 %v465, %v477
        %v480 = vsel %vm478, %v479, 0.0
        %v481 = vmul.f32 %v480, %v480
        %482 = vadd.xlane.f32.xlu0 %v481
        %v483 = vpop.xlane.xlu0 %482
        %v484 = vmul.f32 %v483, 0.03125
        %v485 = vadd.f32 %v484, 1e-05
        %v486 = vrsqrt.pop %v485
        %v487 = vmul.f32 %v486, %v485
        %v488 = vmul.f32 %v487, %v486
        %v489 = vmul.f32 0.5, %v488
        %v490 = vsub.f32 1.5, %v489
        %v491 = vmul.f32 %v486, %v490
        %vm492 = vweird.f32 %v485
        %vm493 = vweird.f32 %v486
        %vm494 = vmor %vm492, %vm493
        %v495 = vsel %vm494, %v486, %v491
        %v496 = vmul.f32 %v480, %v495
        %v497 = vld [vmem:[%s1] sm:$0x1]
        %v499 = vperm.slane %v497, 0
        %v501 = vmul.f32 %v496, %v499
        %v502 = vld [vmem:[%s2] sm:$0x1]
        %v504 = vperm.slane %v502, 0
        %v506 = vadd.f32 %v501, %v504
        %v507 = vpack.c.bf16 %v506, %v506
        %v508 = vld [vmem:[%s3] sm:$0xff]
        %v509 = vld [vmem:[%s3 + $0x8] sm:$0xff]
        %v510 = vld [vmem:[%s3 + $0x10] sm:$0xff]
        %v511 = vld [vmem:[%s3 + $0x18] sm:$0xff]
        %v512 = vld [vmem:[%s3 + $0x20] sm:$0xff]
        %v513 = vld [vmem:[%s3 + $0x28] sm:$0xff]
        %v514 = vld [vmem:[%s3 + $0x30] sm:$0xff]
        %v515 = vld [vmem:[%s3 + $0x38] sm:$0xff]
        %v516 = vld [vmem:[%s3 + $0x40] sm:$0xff]
        %v517 = vld [vmem:[%s3 + $0x48] sm:$0xff]
        %v518 = vld [vmem:[%s3 + $0x50] sm:$0xff]
        %v519 = vld [vmem:[%s3 + $0x58] sm:$0xff]
        %v520 = vld [vmem:[%s3 + $0x60] sm:$0xff]
        %v521 = vld [vmem:[%s3 + $0x68] sm:$0xff]
        %v522 = vld [vmem:[%s3 + $0x70] sm:$0xff]
        %v523 = vld [vmem:[%s3 + $0x78] sm:$0xff]
        %v540 = vunpack.c.l.b16 %v508
        %v541 = vunpack.c.h.b16 %v508
        %v542 = vunpack.c.l.b16 %v509
        %v543 = vunpack.c.h.b16 %v509
        %v544 = vunpack.c.l.b16 %v510
        %v545 = vunpack.c.h.b16 %v510
        %v546 = vunpack.c.l.b16 %v511
        %v547 = vunpack.c.h.b16 %v511
        %v548 = vunpack.c.l.b16 %v512
        %v549 = vunpack.c.h.b16 %v512
        %v550 = vunpack.c.l.b16 %v513
        %v551 = vunpack.c.h.b16 %v513
        %v552 = vunpack.c.l.b16 %v514
        %v553 = vunpack.c.h.b16 %v514
        %v554 = vunpack.c.l.b16 %v515
        %v555 = vunpack.c.h.b16 %v515
        %v556 = vunpack.c.l.b16 %v516
        %v557 = vunpack.c.h.b16 %v516
        %v558 = vunpack.c.l.b16 %v517
        %v559 = vunpack.c.h.b16 %v517
        %v560 = vunpack.c.l.b16 %v518
        %v561 = vunpack.c.h.b16 %v518
        %v562 = vunpack.c.l.b16 %v519
        %v563 = vunpack.c.h.b16 %v519
        %v564 = vunpack.c.l.b16 %v520
        %v565 = vunpack.c.h.b16 %v520
        %v566 = vunpack.c.l.b16 %v521
        %v567 = vunpack.c.h.b16 %v521
        %v568 = vunpack.c.l.b16 %v522
        %v569 = vunpack.c.h.b16 %v522
        %v570 = vunpack.c.l.b16 %v523
        %v571 = vunpack.c.h.b16 %v523
        %v572 = vpack.c.b16 %v542, %v540
        %v573 = vpack.c.b16 %v543, %v541
        %v574 = vpack.c.b16 %v546, %v544
        %v575 = vpack.c.b16 %v547, %v545
        %v576 = vpack.c.b16 %v550, %v548
        %v577 = vpack.c.b16 %v551, %v549
        %v578 = vpack.c.b16 %v554, %v552
        %v579 = vpack.c.b16 %v555, %v553
        %v580 = vpack.c.b16 %v558, %v556
        %v581 = vpack.c.b16 %v559, %v557
        %v582 = vpack.c.b16 %v562, %v560
        %v583 = vpack.c.b16 %v563, %v561
        %v584 = vpack.c.b16 %v566, %v564
        %v585 = vpack.c.b16 %v567, %v565
        %v586 = vpack.c.b16 %v570, %v568
        %v587 = vpack.c.b16 %v571, %v569
        %604 = vmatpush.bf16.msra.mxu0 %v586
        %605 = vmatpush.bf16.msra.mxu0 %v584
        %606 = vmatpush.bf16.msra.mxu0 %v582
        %607 = vmatpush.bf16.msra.mxu0 %v580
        %608 = vmatpush.bf16.msra.mxu0 %v578
        %609 = vmatpush.bf16.msra.mxu0 %v576
        %610 = vmatpush.bf16.msra.mxu0 %v574
        %611 = vmatpush.bf16.msra.mxu0 %v572
        %612 = vmatmul.bf16.gmra.mxu0 %v507
        %v613 = vpop.f32.mrf.mxu0
        %v614 = vadd.f32 0.0, %v613
        %v615 = vpop.f32.mrf.mxu0
        %616 = vdwg.mxu0
        %617 = vmatpush.bf16.msra.mxu0 %v587
        %618 = vmatpush.bf16.msra.mxu0 %v585
        %619 = vmatpush.bf16.msra.mxu0 %v583
        %620 = vmatpush.bf16.msra.mxu0 %v581
        %621 = vmatpush.bf16.msra.mxu0 %v579
        %622 = vmatpush.bf16.msra.mxu0 %v577
        %623 = vmatpush.bf16.msra.mxu0 %v575
        %624 = vmatpush.bf16.msra.mxu0 %v573
        %625 = vmatmul.bf16.gmra.mxu0 %v507
        %v626 = vpop.f32.mrf.mxu0
        %v627 = vadd.f32 0.0, %v626
        %v628 = vpop.f32.mrf.mxu0
        %629 = vdwg.mxu0
        %630 = vst [vmem:[#allocation3 + $0x8] sm:$0xff] %v614
        %v631 = vld [vmem:[%s4] sm:$0xf]
        %v632 = vld [vmem:[#allocation3 + $0x5] sm:$0xff]
        %v633 = vperm.slane %v631, 0
        %v634 = vmul.f32 %v633, %v632
        %v635 = vadd.f32 %v634, 0.0
        %v636 = vld [vmem:[#allocation3 + $0x6] sm:$0xff]
        %v637 = vperm.slane %v631, 1
        %v638 = vmul.f32 %v637, %v636
        %v639 = vadd.f32 %v635, %v638
        %v640 = vld [vmem:[#allocation3 + $0x7] sm:$0xff]
        %v641 = vperm.slane %v631, 2
        %v642 = vmul.f32 %v641, %v640
        %v643 = vadd.f32 %v639, %v642
        %v644 = vld [vmem:[#allocation3 + $0x8] sm:$0xff]
        %v645 = vperm.slane %v631, 3
        %v646 = vmul.f32 %v645, %v644
        %v647 = vadd.f32 %v643, %v646
        %648 = vst [vmem:[#allocation3] sm:$0xff] %v644
        %v649 = vld [vmem:[%s5] sm:$0x1]
        %v651 = vperm.slane %v649, 0
        %v653 = vadd.f32 %v647, %v651
        %v654 = vsub.f32 0.0, %v653
        %v655 = vmul.f32 %v654, 1.442695
        %v656 = vpow.pop %v655
        %v657 = vadd.f32 %v656, 1.0
        %v658 = vrcp.pop %v657
        %v659 = vmul.f32 %v653, %v658
        %v660 = vpack.c.bf16 %v659, %v659
        %v661 = vld [vmem:[%s6] sm:$0xf]
        %v662 = vld [vmem:[%s6 + $0x4] sm:$0xf]
        %v663 = vld [vmem:[%s6 + $0x8] sm:$0xf]
        %v664 = vld [vmem:[%s6 + $0xc] sm:$0xf]
        %v665 = vld [vmem:[%s6 + $0x10] sm:$0xf]
        %v666 = vld [vmem:[%s6 + $0x14] sm:$0xf]
        %v667 = vld [vmem:[%s6 + $0x18] sm:$0xf]
        %v668 = vld [vmem:[%s6 + $0x1c] sm:$0xf]
        %v669 = vld [vmem:[%s6 + $0x20] sm:$0xf]
        %v670 = vld [vmem:[%s6 + $0x24] sm:$0xf]
        %v671 = vld [vmem:[%s6 + $0x28] sm:$0xf]
        %v672 = vld [vmem:[%s6 + $0x2c] sm:$0xf]
        %v673 = vld [vmem:[%s6 + $0x30] sm:$0xf]
        %v674 = vld [vmem:[%s6 + $0x34] sm:$0xf]
        %v675 = vld [vmem:[%s6 + $0x38] sm:$0xf]
        %v676 = vld [vmem:[%s6 + $0x3c] sm:$0xf]
        %v693 = vunpack.c.l.b16 %v661
        %v694 = vunpack.c.l.b16 %v662
        %v695 = vunpack.c.l.b16 %v663
        %v696 = vunpack.c.l.b16 %v664
        %v697 = vunpack.c.l.b16 %v665
        %v698 = vunpack.c.l.b16 %v666
        %v699 = vunpack.c.l.b16 %v667
        %v700 = vunpack.c.l.b16 %v668
        %v701 = vunpack.c.l.b16 %v669
        %v702 = vunpack.c.l.b16 %v670
        %v703 = vunpack.c.l.b16 %v671
        %v704 = vunpack.c.l.b16 %v672
        %v705 = vunpack.c.l.b16 %v673
        %v706 = vunpack.c.l.b16 %v674
        %v707 = vunpack.c.l.b16 %v675
        %v708 = vunpack.c.l.b16 %v676
        %v709 = vpack.c.b16 %v694, %v693
        %v710 = vpack.c.b16 %v696, %v695
        %v711 = vpack.c.b16 %v698, %v697
        %v712 = vpack.c.b16 %v700, %v699
        %v713 = vpack.c.b16 %v702, %v701
        %v714 = vpack.c.b16 %v704, %v703
        %v715 = vpack.c.b16 %v706, %v705
        %v716 = vpack.c.b16 %v708, %v707
        %725 = vmatpush.bf16.msra.mxu0 %v716
        %726 = vmatpush.bf16.msra.mxu0 %v715
        %727 = vmatpush.bf16.msra.mxu0 %v714
        %728 = vmatpush.bf16.msra.mxu0 %v713
        %729 = vmatpush.bf16.msra.mxu0 %v712
        %730 = vmatpush.bf16.msra.mxu0 %v711
        %731 = vmatpush.bf16.msra.mxu0 %v710
        %732 = vmatpush.bf16.msra.mxu0 %v709
        %733 = vmatmul.bf16.gmra.mxu0 %v660
        %v734 = vpop.f32.mrf.mxu0
        %v735 = vadd.f32 0.0, %v734
        %v736 = vpop.f32.mrf.mxu0
        %737 = vdwg.mxu0
        %v738 = vpack.c.bf16 %v735, %v735
        %v739 = vld [vmem:[%s7] sm:$0xf]
        %v740 = vld [vmem:[%s7 + $0x4] sm:$0xf]
        %v741 = vld [vmem:[%s7 + $0x8] sm:$0xf]
        %v742 = vld [vmem:[%s7 + $0xc] sm:$0xf]
        %v743 = vld [vmem:[%s7 + $0x10] sm:$0xf]
        %v744 = vld [vmem:[%s7 + $0x14] sm:$0xf]
        %v745 = vld [vmem:[%s7 + $0x18] sm:$0xf]
        %v746 = vld [vmem:[%s7 + $0x1c] sm:$0xf]
        %v747 = vld [vmem:[%s7 + $0x20] sm:$0xf]
        %v748 = vld [vmem:[%s7 + $0x24] sm:$0xf]
        %v749 = vld [vmem:[%s7 + $0x28] sm:$0xf]
        %v750 = vld [vmem:[%s7 + $0x2c] sm:$0xf]
        %v751 = vld [vmem:[%s7 + $0x30] sm:$0xf]
        %v752 = vld [vmem:[%s7 + $0x34] sm:$0xf]
        %v753 = vld [vmem:[%s7 + $0x38] sm:$0xf]
        %v754 = vld [vmem:[%s7 + $0x3c] sm:$0xf]
        %v755 = vld [vmem:[%s8] sm:$0x1]
        %v757 = vperm.slane %v755, 0
        %v775 = vunpack.c.l.b16 %v739
        %v776 = vunpack.c.l.b16 %v740
        %v777 = vunpack.c.l.b16 %v741
        %v778 = vunpack.c.l.b16 %v742
        %v779 = vunpack.c.l.b16 %v743
        %v780 = vunpack.c.l.b16 %v744
        %v781 = vunpack.c.l.b16 %v745
        %v782 = vunpack.c.l.b16 %v746
        %v783 = vunpack.c.l.b16 %v747
        %v784 = vunpack.c.l.b16 %v748
        %v785 = vunpack.c.l.b16 %v749
        %v786 = vunpack.c.l.b16 %v750
        %v787 = vunpack.c.l.b16 %v751
        %v788 = vunpack.c.l.b16 %v752
        %v789 = vunpack.c.l.b16 %v753
        %v790 = vunpack.c.l.b16 %v754
        %v791 = vpack.c.b16 %v776, %v775
        %v792 = vpack.c.b16 %v778, %v777
        %v793 = vpack.c.b16 %v780, %v779
        %v794 = vpack.c.b16 %v782, %v781
        %v795 = vpack.c.b16 %v784, %v783
        %v796 = vpack.c.b16 %v786, %v785
        %v797 = vpack.c.b16 %v788, %v787
        %v798 = vpack.c.b16 %v790, %v789
        %807 = vmatpush.bf16.msra.mxu0 %v798
        %808 = vmatpush.bf16.msra.mxu0 %v797
        %809 = vmatpush.bf16.msra.mxu0 %v796
        %810 = vmatpush.bf16.msra.mxu0 %v795
        %811 = vmatpush.bf16.msra.mxu0 %v794
        %812 = vmatpush.bf16.msra.mxu0 %v793
        %813 = vmatpush.bf16.msra.mxu0 %v792
        %814 = vmatpush.bf16.msra.mxu0 %v791
        %815 = vmatmul.bf16.gmra.mxu0 %v738
        %v816 = vpop.f32.mrf.mxu0
        %v817 = vadd.f32 %v757, %v816
        %v818 = vpop.f32.mrf.mxu0
        %819 = vdwg.mxu0
        %v820 = vmax.f32 %v817, 0.0
        %v821 = vand.u32 2147483647, %v817
        %v822 = vsub.f32 0.0, %v821
        %v823 = vmul.f32 %v822, 1.442695
        %v824 = vpow.pop %v823
        %v825 = vadd.f32 %v824, 1.0
        %v826 = vlog2.pop %v825
        %v827 = vmul.f32 %v826, 0.6931472
        %v828 = vadd.f32 %v820, %v827
        %v829 = vld [vmem:[%s9] sm:$0xf]
        %v830 = vld [vmem:[%s9 + $0x4] sm:$0xf]
        %v831 = vld [vmem:[%s9 + $0x8] sm:$0xf]
        %v832 = vld [vmem:[%s9 + $0xc] sm:$0xf]
        %v837 = vunpack.c.l.b16 %v829
        %v838 = vunpack.c.l.b16 %v830
        %v839 = vunpack.c.l.b16 %v831
        %v840 = vunpack.c.l.b16 %v832
        %v841 = vpack.c.b16 %v838, %v837
        %v842 = vpack.c.b16 %v840, %v839
        %845 = vmatpush.bf16.xpose.msra.mxu0 0
        %846 = vmatpush.bf16.xpose.msra.mxu0 0
        %847 = vmatpush.bf16.xpose.msra.mxu0 0
        %848 = vmatpush.bf16.xpose.msra.mxu0 0
        %849 = vmatpush.bf16.xpose.msra.mxu0 0
        %850 = vmatpush.bf16.xpose.msra.mxu0 0
        %851 = vmatpush.bf16.xpose.msra.mxu0 0
        %852 = vmatpush.bf16.xpose.msra.mxu0 %v660
        %853 = vmatmul.bf16.gmra.mxu0 %v841
        %v854 = vpop.f32.mrf.mxu0
        %v855 = vadd.f32 0.0, %v854
        %v856 = vpop.f32.mrf.mxu0
        %v857 = vadd.f32 0.0, %v856
        %858 = vmatmul.bf16.gmra.mxu0 %v842
        %v859 = vpop.f32.mrf.mxu0
        %v860 = vadd.f32 0.0, %v859
        %v861 = vpop.f32.mrf.mxu0
        %v862 = vadd.f32 0.0, %v861
        %863 = vdwg.mxu0
        %v864 = vld [vmem:[%s10] sm:$0xff]
        %v865 = vld [vmem:[%s10 + $0x8] sm:$0xff]
        %v866 = vmul.f32 %v828, %v659
        %v867 = vperm.slane %v828, 0
        %v868 = vmul.f32 %v867, %v864
        %v869 = vmul.f32 %v867, %v865
        %v870 = vmul.f32 %v868, 1.442695
        %v871 = vpow.pop %v870
        %v872 = vmul.f32 %v869, 1.442695
        %v873 = vpow.pop %v872
        %v874 = vperm.slane %v828, 1
        %v875 = vmul.f32 %v874, %v864
        %v876 = vmul.f32 %v874, %v865
        %v877 = vmul.f32 %v875, 1.442695
        %v878 = vpow.pop %v877
        %v879 = vmul.f32 %v876, 1.442695
        %v880 = vpow.pop %v879
        %v881 = vperm.slane %v828, 2
        %v882 = vmul.f32 %v881, %v864
        %v883 = vmul.f32 %v881, %v865
        %v884 = vmul.f32 %v882, 1.442695
        %v885 = vpow.pop %v884
        %v886 = vmul.f32 %v883, 1.442695
        %v887 = vpow.pop %v886
        %v888 = vperm.slane %v828, 3
        %v889 = vmul.f32 %v888, %v864
        %v890 = vmul.f32 %v888, %v865
        %v891 = vmul.f32 %v889, 1.442695
        %v892 = vpow.pop %v891
        %v893 = vmul.f32 %v890, 1.442695
        %v894 = vpow.pop %v893
        %v895 = vperm.slane %v828, 4
        %v896 = vmul.f32 %v895, %v864
        %v897 = vmul.f32 %v895, %v865
        %v898 = vmul.f32 %v896, 1.442695
        %v899 = vpow.pop %v898
        %v900 = vmul.f32 %v897, 1.442695
        %v901 = vpow.pop %v900
        %v902 = vperm.slane %v828, 5
        %v903 = vmul.f32 %v902, %v864
        %v904 = vmul.f32 %v902, %v865
        %v905 = vmul.f32 %v903, 1.442695
        %v906 = vpow.pop %v905
        %v907 = vmul.f32 %v904, 1.442695
        %v908 = vpow.pop %v907
        %v909 = vperm.slane %v828, 6
        %v910 = vmul.f32 %v909, %v864
        %v911 = vmul.f32 %v909, %v865
        %v912 = vmul.f32 %v910, 1.442695
        %v913 = vpow.pop %v912
        %v914 = vmul.f32 %v911, 1.442695
        %v915 = vpow.pop %v914
        %v916 = vperm.slane %v828, 7
        %v917 = vmul.f32 %v916, %v864
        %v918 = vmul.f32 %v916, %v865
        %v919 = vmul.f32 %v917, 1.442695
        %v920 = vpow.pop %v919
        %v921 = vmul.f32 %v918, 1.442695
        %v922 = vpow.pop %v921
        %v923 = vperm.slane %v866, 0
        %925 = vset.pattern.permute.xlu0 0
        %926 = vperm.xlu0 %925, %v855
        %v927 = vpop.permute.xlu0 %926
        %930 = vset.pattern.permute.xlu0 0
        %931 = vperm.xlu0 %930, %v857
        %v932 = vpop.permute.xlu0 %931
        %v934 = vmul.f32 %v923, %v927
        %v935 = vmul.f32 %v923, %v932
        %v936 = vperm.slane %v866, 1
        %937 = vset.pattern.permute.xlu0 1
        %938 = vperm.xlu0 %937, %v855
        %v939 = vpop.permute.xlu0 %938
        %941 = vset.pattern.permute.xlu0 1
        %942 = vperm.xlu0 %941, %v857
        %v943 = vpop.permute.xlu0 %942
        %v945 = vmul.f32 %v936, %v939
        %v946 = vmul.f32 %v936, %v943
        %v947 = vperm.slane %v866, 2
        %948 = vset.pattern.permute.xlu0 2
        %949 = vperm.xlu0 %948, %v855
        %v950 = vpop.permute.xlu0 %949
        %952 = vset.pattern.permute.xlu0 2
        %953 = vperm.xlu0 %952, %v857
        %v954 = vpop.permute.xlu0 %953
        %v956 = vmul.f32 %v947, %v950
        %v957 = vmul.f32 %v947, %v954
        %v958 = vperm.slane %v866, 3
        %959 = vset.pattern.permute.xlu0 3
        %960 = vperm.xlu0 %959, %v855
        %v961 = vpop.permute.xlu0 %960
        %963 = vset.pattern.permute.xlu0 3
        %964 = vperm.xlu0 %963, %v857
        %v965 = vpop.permute.xlu0 %964
        %v967 = vmul.f32 %v958, %v961
        %v968 = vmul.f32 %v958, %v965
        %v969 = vperm.slane %v866, 4
        %970 = vset.pattern.permute.xlu0 4
        %971 = vperm.xlu0 %970, %v855
        %v972 = vpop.permute.xlu0 %971
        %974 = vset.pattern.permute.xlu0 4
        %975 = vperm.xlu0 %974, %v857
        %v976 = vpop.permute.xlu0 %975
        %v978 = vmul.f32 %v969, %v972
        %v979 = vmul.f32 %v969, %v976
        %v980 = vperm.slane %v866, 5
        %981 = vset.pattern.permute.xlu0 5
        %982 = vperm.xlu0 %981, %v855
        %v983 = vpop.permute.xlu0 %982
        %985 = vset.pattern.permute.xlu0 5
        %986 = vperm.xlu0 %985, %v857
        %v987 = vpop.permute.xlu0 %986
        %v989 = vmul.f32 %v980, %v983
        %v990 = vmul.f32 %v980, %v987
        %v991 = vperm.slane %v866, 6
        %992 = vset.pattern.permute.xlu0 6
        %993 = vperm.xlu0 %992, %v855
        %v994 = vpop.permute.xlu0 %993
        %996 = vset.pattern.permute.xlu0 6
        %997 = vperm.xlu0 %996, %v857
        %v998 = vpop.permute.xlu0 %997
        %v1000 = vmul.f32 %v991, %v994
        %v1001 = vmul.f32 %v991, %v998
        %v1002 = vperm.slane %v866, 7
        %1003 = vset.pattern.permute.xlu0 7
        %1004 = vperm.xlu0 %1003, %v855
        %v1005 = vpop.permute.xlu0 %1004
        %1007 = vset.pattern.permute.xlu0 7
        %1008 = vperm.xlu0 %1007, %v857
        %v1009 = vpop.permute.xlu0 %1008
        %v1011 = vmul.f32 %v1002, %v1005
        %v1012 = vmul.f32 %v1002, %v1009
        %v1013 = vld [vmem:[#allocation2] sm:$0xff]
        %v1014 = vld [vmem:[#allocation2 + $0x8] sm:$0xff]
        %v1015 = vmul.f32 %v871, %v1013
        %v1016 = vmul.f32 %v873, %v1014
        %v1017 = vadd.f32 %v1015, %v934
        %v1018 = vadd.f32 %v1016, %v935
        %1020 = vset.pattern.permute.xlu0 0
        %1021 = vperm.xlu0 %1020, %v860
        %v1022 = vpop.permute.xlu0 %1021
        %1025 = vset.pattern.permute.xlu0 0
        %1026 = vperm.xlu0 %1025, %v862
        %v1027 = vpop.permute.xlu0 %1026
        %v1029 = vmul.f32 %v1017, %v1022
        %v1030 = vmul.f32 %v1018, %v1027
        %v1031 = vadd.f32 %v1029, %v1030
        %v1032 = vrot.slane %v1031, 4
        %v1033 = vadd.f32 %v1031, %v1032
        %v1034 = vrot.slane %v1033, 2
        %v1035 = vadd.f32 %v1033, %v1034
        %v1036 = vrot.slane %v1035, 1
        %v1037 = vadd.f32 %v1035, %v1036
        %v1038 = vmul.f32 %v878, %v1017
        %v1039 = vmul.f32 %v880, %v1018
        %v1040 = vadd.f32 %v1038, %v945
        %v1041 = vadd.f32 %v1039, %v946
        %1042 = vset.pattern.permute.xlu0 1
        %1043 = vperm.xlu0 %1042, %v860
        %v1044 = vpop.permute.xlu0 %1043
        %1046 = vset.pattern.permute.xlu0 1
        %1047 = vperm.xlu0 %1046, %v862
        %v1048 = vpop.permute.xlu0 %1047
        %v1050 = vmul.f32 %v1040, %v1044
        %v1051 = vmul.f32 %v1041, %v1048
        %v1052 = vadd.f32 %v1050, %v1051
        %v1053 = vrot.slane %v1052, 4
        %v1054 = vadd.f32 %v1052, %v1053
        %v1055 = vrot.slane %v1054, 2
        %v1056 = vadd.f32 %v1054, %v1055
        %v1057 = vrot.slane %v1056, 1
        %v1058 = vadd.f32 %v1056, %v1057
        %v1059 = vmul.f32 %v885, %v1040
        %v1060 = vmul.f32 %v887, %v1041
        %v1061 = vadd.f32 %v1059, %v956
        %v1062 = vadd.f32 %v1060, %v957
        %1063 = vset.pattern.permute.xlu0 2
        %1064 = vperm.xlu0 %1063, %v860
        %v1065 = vpop.permute.xlu0 %1064
        %1067 = vset.pattern.permute.xlu0 2
        %1068 = vperm.xlu0 %1067, %v862
        %v1069 = vpop.permute.xlu0 %1068
        %v1071 = vmul.f32 %v1061, %v1065
        %v1072 = vmul.f32 %v1062, %v1069
        %v1073 = vadd.f32 %v1071, %v1072
        %v1074 = vrot.slane %v1073, 4
        %v1075 = vadd.f32 %v1073, %v1074
        %v1076 = vrot.slane %v1075, 2
        %v1077 = vadd.f32 %v1075, %v1076
        %v1078 = vrot.slane %v1077, 1
        %v1079 = vadd.f32 %v1077, %v1078
        %v1080 = vmul.f32 %v892, %v1061
        %v1081 = vmul.f32 %v894, %v1062
        %v1082 = vadd.f32 %v1080, %v967
        %v1083 = vadd.f32 %v1081, %v968
        %1084 = vset.pattern.permute.xlu0 3
        %1085 = vperm.xlu0 %1084, %v860
        %v1086 = vpop.permute.xlu0 %1085
        %1088 = vset.pattern.permute.xlu0 3
        %1089 = vperm.xlu0 %1088, %v862
        %v1090 = vpop.permute.xlu0 %1089
        %v1092 = vmul.f32 %v1082, %v1086
        %v1093 = vmul.f32 %v1083, %v1090
        %v1094 = vadd.f32 %v1092, %v1093
        %v1095 = vrot.slane %v1094, 4
        %v1096 = vadd.f32 %v1094, %v1095
        %v1097 = vrot.slane %v1096, 2
        %v1098 = vadd.f32 %v1096, %v1097
        %v1099 = vrot.slane %v1098, 1
        %v1100 = vadd.f32 %v1098, %v1099
        %v1101 = vmul.f32 %v899, %v1082
        %v1102 = vmul.f32 %v901, %v1083
        %v1103 = vadd.f32 %v1101, %v978
        %v1104 = vadd.f32 %v1102, %v979
        %1105 = vset.pattern.permute.xlu0 4
        %1106 = vperm.xlu0 %1105, %v860
        %v1107 = vpop.permute.xlu0 %1106
        %1109 = vset.pattern.permute.xlu0 4
        %1110 = vperm.xlu0 %1109, %v862
        %v1111 = vpop.permute.xlu0 %1110
        %v1113 = vmul.f32 %v1103, %v1107
        %v1114 = vmul.f32 %v1104, %v1111
        %v1115 = vadd.f32 %v1113, %v1114
        %v1116 = vrot.slane %v1115, 4
        %v1117 = vadd.f32 %v1115, %v1116
        %v1118 = vrot.slane %v1117, 2
        %v1119 = vadd.f32 %v1117, %v1118
        %v1120 = vrot.slane %v1119, 1
        %v1121 = vadd.f32 %v1119, %v1120
        %v1122 = vmul.f32 %v906, %v1103
        %v1123 = vmul.f32 %v908, %v1104
        %v1124 = vadd.f32 %v1122, %v989
        %v1125 = vadd.f32 %v1123, %v990
        %1126 = vset.pattern.permute.xlu0 5
        %1127 = vperm.xlu0 %1126, %v860
        %v1128 = vpop.permute.xlu0 %1127
        %1130 = vset.pattern.permute.xlu0 5
        %1131 = vperm.xlu0 %1130, %v862
        %v1132 = vpop.permute.xlu0 %1131
        %v1134 = vmul.f32 %v1124, %v1128
        %v1135 = vmul.f32 %v1125, %v1132
        %v1136 = vadd.f32 %v1134, %v1135
        %v1137 = vrot.slane %v1136, 4
        %v1138 = vadd.f32 %v1136, %v1137
        %v1139 = vrot.slane %v1138, 2
        %v1140 = vadd.f32 %v1138, %v1139
        %v1141 = vrot.slane %v1140, 1
        %v1142 = vadd.f32 %v1140, %v1141
        %v1143 = vmul.f32 %v913, %v1124
        %v1144 = vmul.f32 %v915, %v1125
        %v1145 = vadd.f32 %v1143, %v1000
        %v1146 = vadd.f32 %v1144, %v1001
        %1147 = vset.pattern.permute.xlu0 6
        %1148 = vperm.xlu0 %1147, %v860
        %v1149 = vpop.permute.xlu0 %1148
        %1151 = vset.pattern.permute.xlu0 6
        %1152 = vperm.xlu0 %1151, %v862
        %v1153 = vpop.permute.xlu0 %1152
        %v1155 = vmul.f32 %v1145, %v1149
        %v1156 = vmul.f32 %v1146, %v1153
        %v1157 = vadd.f32 %v1155, %v1156
        %v1158 = vrot.slane %v1157, 4
        %v1159 = vadd.f32 %v1157, %v1158
        %v1160 = vrot.slane %v1159, 2
        %v1161 = vadd.f32 %v1159, %v1160
        %v1162 = vrot.slane %v1161, 1
        %v1163 = vadd.f32 %v1161, %v1162
        %v1164 = vmul.f32 %v920, %v1145
        %v1165 = vmul.f32 %v922, %v1146
        %v1166 = vadd.f32 %v1164, %v1011
        %v1167 = vadd.f32 %v1165, %v1012
        %1168 = vset.pattern.permute.xlu0 7
        %1169 = vperm.xlu0 %1168, %v860
        %v1170 = vpop.permute.xlu0 %1169
        %1172 = vset.pattern.permute.xlu0 7
        %1173 = vperm.xlu0 %1172, %v862
        %v1174 = vpop.permute.xlu0 %1173
        %v1176 = vmul.f32 %v1166, %v1170
        %v1177 = vmul.f32 %v1167, %v1174
        %v1178 = vadd.f32 %v1176, %v1177
        %v1179 = vrot.slane %v1178, 4
        %v1180 = vadd.f32 %v1178, %v1179
        %v1181 = vrot.slane %v1180, 2
        %v1182 = vadd.f32 %v1180, %v1181
        %v1183 = vrot.slane %v1182, 1
        %v1184 = vadd.f32 %v1182, %v1183
        %1185 = vst [vmem:[#allocation2] sm:$0xff] %v1166
        %1186 = vst [vmem:[#allocation2 + $0x8] sm:$0xff] %v1167
        %vm1187 = vcmask 1040384
        %v1188 = vsel %vm1187, %v1037, %v1058
        %vm1189 = vcmask 1041408
        %v1190 = vsel %vm1189, %v1188, %v1079
        %vm1191 = vcmask 1042432
        %v1192 = vsel %vm1191, %v1190, %v1100
        %vm1193 = vcmask 1043456
        %v1194 = vsel %vm1193, %v1192, %v1121
        %vm1195 = vcmask 1044480
        %v1196 = vsel %vm1195, %v1194, %v1142
        %vm1197 = vcmask 1045504
        %v1198 = vsel %vm1197, %v1196, %v1163
        %vm1199 = vcmask 1046528
        %v1200 = vsel %vm1199, %v1198, %v1184
        %v1201 = vld [vmem:[%s11] sm:$0x1]
        %v1203 = vperm.slane %v1201, 0
        %v1205 = vmul.f32 %v1203, %v659
        %v1206 = vadd.f32 %v1200, %v1205
        %v1207 = vsub.f32 0.0, %v627
        %v1208 = vmul.f32 %v1207, 1.442695
        %v1209 = vpow.pop %v1208
        %v1210 = vadd.f32 %v1209, 1.0
        %v1211 = vrcp.pop %v1210
        %v1212 = vmul.f32 %v627, %v1211
        %v1213 = vmul.f32 %v1206, %v1212
        %v1214 = vpack.c.bf16 %v1213, %v1213
        %v1215 = vld [vmem:[%s12] sm:$0xf]
        %v1216 = vld [vmem:[%s12 + $0x4] sm:$0xf]
        %v1217 = vld [vmem:[%s12 + $0x8] sm:$0xf]
        %v1218 = vld [vmem:[%s12 + $0xc] sm:$0xf]
        %v1219 = vld [vmem:[%s12 + $0x10] sm:$0xf]
        %v1220 = vld [vmem:[%s12 + $0x14] sm:$0xf]
        %v1221 = vld [vmem:[%s12 + $0x18] sm:$0xf]
        %v1222 = vld [vmem:[%s12 + $0x1c] sm:$0xf]
        %v1223 = vld [vmem:[%s12 + $0x20] sm:$0xf]
        %v1224 = vld [vmem:[%s12 + $0x24] sm:$0xf]
        %v1225 = vld [vmem:[%s12 + $0x28] sm:$0xf]
        %v1226 = vld [vmem:[%s12 + $0x2c] sm:$0xf]
        %v1227 = vld [vmem:[%s12 + $0x30] sm:$0xf]
        %v1228 = vld [vmem:[%s12 + $0x34] sm:$0xf]
        %v1229 = vld [vmem:[%s12 + $0x38] sm:$0xf]
        %v1230 = vld [vmem:[%s12 + $0x3c] sm:$0xf]
        %v1247 = vunpack.c.l.b16 %v1215
        %v1248 = vunpack.c.l.b16 %v1216
        %v1249 = vunpack.c.l.b16 %v1217
        %v1250 = vunpack.c.l.b16 %v1218
        %v1251 = vunpack.c.l.b16 %v1219
        %v1252 = vunpack.c.l.b16 %v1220
        %v1253 = vunpack.c.l.b16 %v1221
        %v1254 = vunpack.c.l.b16 %v1222
        %v1255 = vunpack.c.l.b16 %v1223
        %v1256 = vunpack.c.l.b16 %v1224
        %v1257 = vunpack.c.l.b16 %v1225
        %v1258 = vunpack.c.l.b16 %v1226
        %v1259 = vunpack.c.l.b16 %v1227
        %v1260 = vunpack.c.l.b16 %v1228
        %v1261 = vunpack.c.l.b16 %v1229
        %v1262 = vunpack.c.l.b16 %v1230
        %v1263 = vpack.c.b16 %v1248, %v1247
        %v1264 = vpack.c.b16 %v1250, %v1249
        %v1265 = vpack.c.b16 %v1252, %v1251
        %v1266 = vpack.c.b16 %v1254, %v1253
        %v1267 = vpack.c.b16 %v1256, %v1255
        %v1268 = vpack.c.b16 %v1258, %v1257
        %v1269 = vpack.c.b16 %v1260, %v1259
        %v1270 = vpack.c.b16 %v1262, %v1261
        %1279 = vmatpush.bf16.msra.mxu0 %v1270
        %1280 = vmatpush.bf16.msra.mxu0 %v1269
        %1281 = vmatpush.bf16.msra.mxu0 %v1268
        %1282 = vmatpush.bf16.msra.mxu0 %v1267
        %1283 = vmatpush.bf16.msra.mxu0 %v1266
        %1284 = vmatpush.bf16.msra.mxu0 %v1265
        %1285 = vmatpush.bf16.msra.mxu0 %v1264
        %1286 = vmatpush.bf16.msra.mxu0 %v1263
        %1287 = vmatmul.bf16.gmra.mxu0 %v1214
        %v1288 = vpop.f32.mrf.mxu0
        %v1289 = vadd.f32 0.0, %v1288
        %v1290 = vpop.f32.mrf.mxu0
        %1291 = vdwg.mxu0
        %v1292 = vadd.f32 %v465, %v1289
        %1293 = vst [vmem:[%s455] sm:$0xff] %v1292
        %s1294 = sand.u32 %s329, 1
        %s1295 = scalar_lea.sflag [#allocation5], %s1294
        %s1296 = sand.u32 %s329, 1
        %s1297 = smul.addr %s1296, 8
        %s1298 = scalar_lea.vmem [#allocation4], %s1297
        // Predicated region
        $region77: #{mamba_block_forward.1} parent=71 // pred_check
          %p1299 = pneg %p339
        $region78: #{mamba_block_forward.1} parent=71 // pred_check_branch
          %1301 = sbr.rel (%p1299) target = $region80
        $region79: #{mamba_block_forward.1} parent=71 // pred_region
          %1303 = vsyncadd %s1295, 0
          %s1304 = smul.addr %s31, 2
          %s1305 = sadd.s32 %s32, %s1304
          %s1306 = smul.addr %s1305, 8
          %s1307 = scalar_lea.hbm %s13, %s1306
          %s1309 = sshll.u32 %s1298, 4
          %s1310 = int_to_ptr.vmem [resolvable:$true] %s1309
          %s1311 = sshll.u32 %s1307, 4
          %s1312 = int_to_ptr.hbm [resolvable:$true] %s1311
          %1314 = dma.vmem_to_hbm [thread:$0]  %s1310, 128, %s1312, %s1295
        $region80: #{mamba_block_forward.1} parent=71 // pred_fallthru
          _
      $region72: #{mamba_block_forward.1} parent=5 // pred_fallthru
        _
      %p1315 = scmp.le.s32.totalorder 2, %s22
      // Predicated region
      $region81: #{mamba_block_forward.1} parent=5 // pred_check
        %p1316 = pneg %p1315
      $region82: #{mamba_block_forward.1} parent=5 // pred_check_branch
        %1318 = sbr.rel (%p1316) target = $region84
      $region83: #{mamba_block_forward.1} parent=5 // pred_region
        %s1319 = ssub.s32 %s22, 2
        // Predicated region
        $region85: #{mamba_block_forward.1} parent=83 // pred_check
          %p1320 = pneg %p345
        $region86: #{mamba_block_forward.1} parent=83 // pred_check_branch
          %1322 = sbr.rel (%p1320) target = $region88
        $region87: #{mamba_block_forward.1} parent=83 // pred_region
          %s1323 = sand.u32 %s330, 1
          %s1324 = scalar_lea.sflag [#allocation5], %s1323
          %s1325 = sand.u32 %s330, 1
          %s1326 = smul.addr %s1325, 8
          %s1327 = scalar_lea.vmem [#allocation4], %s1326
          %1329 = dma.done %s1324, 128
        $region88: #{mamba_block_forward.1} parent=83 // pred_fallthru
          _
      $region84: #{mamba_block_forward.1} parent=5 // pred_fallthru
        _
    $region6: #{mamba_block_forward.1} parent=1 // loop_footer
      %s26 = sadd.s32 1, %s22
    $region7: #{mamba_block_forward.1} parent=1 // loop_footer_branch
      %21 = sbr.rel target = $region3
    $region8: #{mamba_block_forward.1} parent=1 // loop_exit
      _
    %1330 = vsyncpa [#allocation5], 1
    %s1331 = scalar_lea.sflag [#allocation5], 1
    %1332 = vsyncpa %s1331, 1

</llo_original>
